<compile_context>
chip_gen: v5e
topology: v5e:2x2
jax: 0.10.0
libtpu: 0.0.40
codegen_flags: <defaults>
</compile_context>

<pallas_src>
import jax
import jax.numpy as jnp
from jax import lax
from jax.experimental import pallas as pl
from jax.experimental.pallas import tpu as pltpu

# ---------------- problem sizes ----------------
NODES_PER_GRAPH = 8
GRAPHS_PER_BLOCK = 16
NB = NODES_PER_GRAPH * GRAPHS_PER_BLOCK      # 128 nodes per block (fills sublanes)
N_BLOCKS = 2                                 # grid axis ("parallel")
N_GRAPHS = N_BLOCKS * GRAPHS_PER_BLOCK       # 32 graphs total

NUM_ATOM_TYPE = 8
HIDDEN = 32
OUT_DIM = 32
N_LAYERS = 4
NUM_CLASSES = 1                              # task == 'regression'
PRED_PAD = 128                               # lane-dense padded prediction width


# ---------------- fused kernel ----------------

def gin_fused_kernel(a_ref, x_ref, snorm_ref, m_ref,
                     wemb_ref, w1_ref, b1_ref, w2_ref, b2_ref,
                     wro_ref, wpred_ref, bpred_ref, o_ref):
    a = a_ref[...]            # (NB, NB) block-diagonal adjacency of this graph block
    snorm = snorm_ref[...]    # (NB, 1)  sqrt(1/n_nodes) per node

    # h = embedding_lin(h)    (nn.Linear, bias=False)
    h0 = jnp.dot(x_ref[...], wemb_ref[...], preferred_element_type=jnp.float32)

    def gin_layer(l, h):
        # neighbor aggregation 'sum': agg = A @ h ; eps = 0 -> z = h + agg
        agg = jnp.dot(a, h, preferred_element_type=jnp.float32)
        z = h + agg
        # 2-layer MLP: relu(z @ W1 + b1) @ W2 + b2
        # TODO(synk): batch_norm/layer_norm modeled as inference-mode identity
        # (running mean 0, var 1, gamma 1, beta 0); training-mode batch stats
        # are not reproduced here.
        h1 = jnp.maximum(
            jnp.dot(z, w1_ref[l], preferred_element_type=jnp.float32) + b1_ref[l], 0.0)
        h2 = jnp.dot(h1, w2_ref[l], preferred_element_type=jnp.float32) + b2_ref[l]
        # ApplyNodeFunc ReLU, then graph_norm (* snorm_n).  The GINLayer ReLU
        # after graph_norm is omitted: snorm_n > 0 makes it a no-op.
        h2 = jnp.maximum(h2, 0.0) * snorm
        # GINNet residual: h += h_in  (h_in = embedding output, per the spec forward)
        return h2 + h0

    h = lax.fori_loop(0, N_LAYERS, gin_layer, h0, unroll=True)

    # readout: g.ndata['h'] = linear_ro(h); hg = dgl.mean_nodes(g,'h');
    # score = linear_prediction(hg).  Mean pooling is folded into m_ref
    # (rows pre-scaled by 1/n_nodes); the prediction head is lane-padded to 128.
    hro = jnp.dot(h, wro_ref[...], preferred_element_type=jnp.float32)
    hg = jnp.dot(m_ref[...], hro, preferred_element_type=jnp.float32)
    o_ref[...] = (jnp.dot(hg, wpred_ref[...], preferred_element_type=jnp.float32)
                  + bpred_ref[...])


# ---------------- wrapper ----------------

def gin_net_forward(A, X, snorm_n, M_mean, params):
    in_specs = [
        pl.BlockSpec((None, NB, NB), lambda b: (b, 0, 0)),                    # A
        pl.BlockSpec((None, NB, NUM_ATOM_TYPE), lambda b: (b, 0, 0)),         # X
        pl.BlockSpec((None, NB, 1), lambda b: (b, 0, 0)),                     # snorm_n
        pl.BlockSpec((None, GRAPHS_PER_BLOCK, NB), lambda b: (b, 0, 0)),      # M (mean pool)
        pl.BlockSpec((NUM_ATOM_TYPE, HIDDEN), lambda b: (0, 0)),              # W_emb
        pl.BlockSpec((N_LAYERS, HIDDEN, HIDDEN), lambda b: (0, 0, 0)),        # W1 (stacked)
        pl.BlockSpec((N_LAYERS, 1, HIDDEN), lambda b: (0, 0, 0)),             # b1
        pl.BlockSpec((N_LAYERS, HIDDEN, HIDDEN), lambda b: (0, 0, 0)),        # W2
        pl.BlockSpec((N_LAYERS, 1, HIDDEN), lambda b: (0, 0, 0)),             # b2
        pl.BlockSpec((HIDDEN, OUT_DIM), lambda b: (0, 0)),                    # W_ro
        pl.BlockSpec((OUT_DIM, PRED_PAD), lambda b: (0, 0)),                  # W_pred (padded)
        pl.BlockSpec((1, PRED_PAD), lambda b: (0, 0)),                        # b_pred (padded)
    ]
    out_specs = pl.BlockSpec((GRAPHS_PER_BLOCK, PRED_PAD), lambda b: (b, 0))

    out = pl.pallas_call(
        gin_fused_kernel,
        out_shape=jax.ShapeDtypeStruct((N_GRAPHS, PRED_PAD), jnp.float32),
        grid_spec=pltpu.PrefetchScalarGridSpec(
            num_scalar_prefetch=0,
            grid=(N_BLOCKS,),
            in_specs=in_specs,
            out_specs=out_specs,
        ),
        compiler_params=pltpu.CompilerParams(
            dimension_semantics=("parallel",)),   # v7x: shard graph blocks over 2 TCs
    )(A, X, snorm_n, M_mean,
      params["W_emb"], params["W1"], params["b1"], params["W2"], params["b2"],
      params["W_ro"], params["W_pred"], params["b_pred"])

    # strip the lane padding -> (num_graphs, 1) regression score
    return out[:, :NUM_CLASSES]


# ---------------- parameter / input construction ----------------

def make_params(key):
    ks = jax.random.split(key, 8)
    s = 0.1
    params = {
        # weights stored transposed ([in, out]) so the kernel computes x @ W
        "W_emb": s * jax.random.normal(ks[0], (NUM_ATOM_TYPE, HIDDEN), jnp.float32),
        "W1": s * jax.random.normal(ks[1], (N_LAYERS, HIDDEN, HIDDEN), jnp.float32),
        "b1": s * jax.random.normal(ks[2], (N_LAYERS, 1, HIDDEN), jnp.float32),
        "W2": s * jax.random.normal(ks[3], (N_LAYERS, HIDDEN, HIDDEN), jnp.float32),
        "b2": s * jax.random.normal(ks[4], (N_LAYERS, 1, HIDDEN), jnp.float32),
        "W_ro": s * jax.random.normal(ks[5], (HIDDEN, OUT_DIM), jnp.float32),
    }
    w_pred = s * jax.random.normal(ks[6], (OUT_DIM, NUM_CLASSES), jnp.float32)
    b_pred = s * jax.random.normal(ks[7], (1, NUM_CLASSES), jnp.float32)
    # pad the prediction head to 128 lanes (only column 0 is real)
    params["W_pred"] = jnp.pad(w_pred, ((0, 0), (0, PRED_PAD - NUM_CLASSES)))
    params["b_pred"] = jnp.pad(b_pred, ((0, 0), (0, PRED_PAD - NUM_CLASSES)))
    return params


def make_graphs():
    # 8-node undirected ring adjacency
    ring = jnp.roll(jnp.eye(NODES_PER_GRAPH, dtype=jnp.float32), 1, axis=1)
    ring = ring + ring.T
    # block-diagonal adjacency for GRAPHS_PER_BLOCK rings -> (NB, NB)
    a_block = jnp.kron(jnp.eye(GRAPHS_PER_BLOCK, dtype=jnp.float32), ring)
    A = jnp.tile(a_block[None], (N_BLOCKS, 1, 1))                    # (B, NB, NB)
    # snorm_n = sqrt(1 / num_nodes_in_graph) per node
    snorm_n = jnp.full((N_BLOCKS, NB, 1),
                       1.0 / jnp.sqrt(float(NODES_PER_GRAPH)), jnp.float32)
    # mean-pool membership matrix, rows pre-scaled by 1/num_nodes
    m_block = jnp.kron(jnp.eye(GRAPHS_PER_BLOCK, dtype=jnp.float32),
                       jnp.ones((1, NODES_PER_GRAPH), jnp.float32)) / NODES_PER_GRAPH
    M_mean = jnp.tile(m_block[None], (N_BLOCKS, 1, 1))               # (B, G/B, NB)
    return A, snorm_n, M_mean


if __name__ == "__main__":
    key = jax.random.PRNGKey(0)
    k_param, k_feat = jax.random.split(key)

    params = make_params(k_param)
    A, snorm_n, M_mean = make_graphs()
    # node features [B, NB, num_atom_type]  (h.float() in the reference forward)
    X = jax.random.normal(k_feat, (N_BLOCKS, NB, NUM_ATOM_TYPE), jnp.float32)

    score = gin_net_forward(A, X, snorm_n, M_mean, params)
    score = jax.block_until_ready(score)
    assert score.shape == (N_GRAPHS, NUM_CLASSES)
    assert bool(jnp.all(jnp.isfinite(score)))
    print("KERNEL_OK")
</pallas_src>

<mosaic_0001>
module attributes {stable_mosaic.version = 11 : i64} {
  func.func @gin_fused_kernel(%arg0: i32, %arg1: memref<1x128x128xf32, #tpu.memory_space<vmem>>, %arg2: memref<1x128x8xf32, #tpu.memory_space<vmem>>, %arg3: memref<1x128x1xf32, #tpu.memory_space<vmem>>, %arg4: memref<1x16x128xf32, #tpu.memory_space<vmem>>, %arg5: memref<8x32xf32, #tpu.memory_space<vmem>>, %arg6: memref<4x32x32xf32, #tpu.memory_space<vmem>>, %arg7: memref<4x1x32xf32, #tpu.memory_space<vmem>>, %arg8: memref<4x32x32xf32, #tpu.memory_space<vmem>>, %arg9: memref<4x1x32xf32, #tpu.memory_space<vmem>>, %arg10: memref<32x32xf32, #tpu.memory_space<vmem>>, %arg11: memref<32x128xf32, #tpu.memory_space<vmem>>, %arg12: memref<1x128xf32, #tpu.memory_space<vmem>>, %arg13: memref<16x128xf32, #tpu.memory_space<vmem>>) attributes {dimension_semantics = [#tpu.dimension_semantics<parallel>], iteration_bounds = array<i64: 2>, scalar_prefetch = 0 : i64, scratch_operands = 0 : i64, tpu.core_type = #tpu.core_type<tc>, window_params = [{transform_indices = @transform_0, window_bounds = array<i64: 1, 128, 128>}, {transform_indices = @transform_1, window_bounds = array<i64: 1, 128, 8>}, {transform_indices = @transform_2, window_bounds = array<i64: 1, 128, 1>}, {transform_indices = @transform_3, window_bounds = array<i64: 1, 16, 128>}, {pipeline_mode = #tpu.pipeline_mode<synchronous>, transform_indices = @transform_4, window_bounds = array<i64: 8, 32>}, {pipeline_mode = #tpu.pipeline_mode<synchronous>, transform_indices = @transform_5, window_bounds = array<i64: 4, 32, 32>}, {pipeline_mode = #tpu.pipeline_mode<synchronous>, transform_indices = @transform_6, window_bounds = array<i64: 4, 1, 32>}, {pipeline_mode = #tpu.pipeline_mode<synchronous>, transform_indices = @transform_7, window_bounds = array<i64: 4, 32, 32>}, {pipeline_mode = #tpu.pipeline_mode<synchronous>, transform_indices = @transform_8, window_bounds = array<i64: 4, 1, 32>}, {pipeline_mode = #tpu.pipeline_mode<synchronous>, transform_indices = @transform_9, window_bounds = array<i64: 32, 32>}, {pipeline_mode = #tpu.pipeline_mode<synchronous>, transform_indices = @transform_10, window_bounds = array<i64: 32, 128>}, {pipeline_mode = #tpu.pipeline_mode<synchronous>, transform_indices = @transform_11, window_bounds = array<i64: 1, 128>}, {transform_indices = @transform_12, window_bounds = array<i64: 16, 128>}]} {
    %c0 = arith.constant 0 : index
    %c0_0 = arith.constant 0 : index
    %c0_1 = arith.constant 0 : index
    %0 = vector.load %arg1[%c0, %c0_0, %c0_1] : memref<1x128x128xf32, #tpu.memory_space<vmem>>, vector<1x128x128xf32>
    %1 = vector.shape_cast %0 : vector<1x128x128xf32> to vector<128x128xf32>
    %c0_2 = arith.constant 0 : index
    %c0_3 = arith.constant 0 : index
    %c0_4 = arith.constant 0 : index
    %2 = vector.load %arg3[%c0_2, %c0_3, %c0_4] : memref<1x128x1xf32, #tpu.memory_space<vmem>>, vector<1x128x1xf32>
    %3 = vector.shape_cast %2 : vector<1x128x1xf32> to vector<128x1xf32>
    %c0_5 = arith.constant 0 : index
    %c0_6 = arith.constant 0 : index
    %c0_7 = arith.constant 0 : index
    %4 = vector.load %arg2[%c0_5, %c0_6, %c0_7] : memref<1x128x8xf32, #tpu.memory_space<vmem>>, vector<1x128x8xf32>
    %5 = vector.shape_cast %4 : vector<1x128x8xf32> to vector<128x8xf32>
    %c0_8 = arith.constant 0 : index
    %c0_9 = arith.constant 0 : index
    %6 = vector.load %arg5[%c0_8, %c0_9] : memref<8x32xf32, #tpu.memory_space<vmem>>, vector<8x32xf32>
    %cst = arith.constant dense<0.000000e+00> : vector<128x32xf32>
    %7 = tpu.matmul %5, %6, %cst {dimension_numbers = #tpu.dot_dimension_numbers<[1], [0], [0], [1], [0, 0, 1, 1], [], []>} : vector<128x8xf32>, vector<8x32xf32>, vector<128x32xf32> -> vector<128x32xf32>
    %c0_i32 = arith.constant 0 : i32
    %cst_10 = arith.constant dense<0.000000e+00> : vector<128x32xf32>
    %8 = tpu.matmul %1, %7, %cst_10 {dimension_numbers = #tpu.dot_dimension_numbers<[1], [0], [0], [1], [0, 0, 1, 1], [], []>} : vector<128x128xf32>, vector<128x32xf32>, vector<128x32xf32> -> vector<128x32xf32>
    %9 = arith.addf %7, %8 : vector<128x32xf32>
    %10 = arith.index_cast %c0_i32 : i32 to index
    %c0_11 = arith.constant 0 : index
    %c0_12 = arith.constant 0 : index
    %11 = vector.load %arg6[%10, %c0_11, %c0_12] : memref<4x32x32xf32, #tpu.memory_space<vmem>>, vector<1x32x32xf32>
    %12 = vector.shape_cast %11 : vector<1x32x32xf32> to vector<32x32xf32>
    %cst_13 = arith.constant dense<0.000000e+00> : vector<128x32xf32>
    %13 = tpu.matmul %9, %12, %cst_13 {dimension_numbers = #tpu.dot_dimension_numbers<[1], [0], [0], [1], [0, 0, 1, 1], [], []>} : vector<128x32xf32>, vector<32x32xf32>, vector<128x32xf32> -> vector<128x32xf32>
    %14 = arith.index_cast %c0_i32 : i32 to index
    %c0_14 = arith.constant 0 : index
    %c0_15 = arith.constant 0 : index
    %15 = vector.load %arg7[%14, %c0_14, %c0_15] : memref<4x1x32xf32, #tpu.memory_space<vmem>>, vector<1x1x32xf32>
    %16 = vector.shape_cast %15 : vector<1x1x32xf32> to vector<1x32xf32>
    %17 = vector.broadcast %16 : vector<1x32xf32> to vector<128x32xf32>
    %18 = arith.addf %13, %17 : vector<128x32xf32>
    %cst_16 = arith.constant 0.000000e+00 : f32
    %19 = vector.broadcast %cst_16 : f32 to vector<128x32xf32>
    %20 = arith.maximumf %18, %19 : vector<128x32xf32>
    %21 = arith.index_cast %c0_i32 : i32 to index
    %c0_17 = arith.constant 0 : index
    %c0_18 = arith.constant 0 : index
    %22 = vector.load %arg8[%21, %c0_17, %c0_18] : memref<4x32x32xf32, #tpu.memory_space<vmem>>, vector<1x32x32xf32>
    %23 = vector.shape_cast %22 : vector<1x32x32xf32> to vector<32x32xf32>
    %cst_19 = arith.constant dense<0.000000e+00> : vector<128x32xf32>
    %24 = tpu.matmul %20, %23, %cst_19 {dimension_numbers = #tpu.dot_dimension_numbers<[1], [0], [0], [1], [0, 0, 1, 1], [], []>} : vector<128x32xf32>, vector<32x32xf32>, vector<128x32xf32> -> vector<128x32xf32>
    %25 = arith.index_cast %c0_i32 : i32 to index
    %c0_20 = arith.constant 0 : index
    %c0_21 = arith.constant 0 : index
    %26 = vector.load %arg9[%25, %c0_20, %c0_21] : memref<4x1x32xf32, #tpu.memory_space<vmem>>, vector<1x1x32xf32>
    %27 = vector.shape_cast %26 : vector<1x1x32xf32> to vector<1x32xf32>
    %28 = vector.broadcast %27 : vector<1x32xf32> to vector<128x32xf32>
    %29 = arith.addf %24, %28 : vector<128x32xf32>
    %cst_22 = arith.constant 0.000000e+00 : f32
    %30 = vector.broadcast %cst_22 : f32 to vector<128x32xf32>
    %31 = arith.maximumf %29, %30 : vector<128x32xf32>
    %32 = vector.broadcast %3 : vector<128x1xf32> to vector<128x32xf32>
    %33 = arith.mulf %31, %32 : vector<128x32xf32>
    %34 = arith.addf %33, %7 : vector<128x32xf32>
    %c1_i32 = arith.constant 1 : i32
    %cst_23 = arith.constant dense<0.000000e+00> : vector<128x32xf32>
    %35 = tpu.matmul %1, %34, %cst_23 {dimension_numbers = #tpu.dot_dimension_numbers<[1], [0], [0], [1], [0, 0, 1, 1], [], []>} : vector<128x128xf32>, vector<128x32xf32>, vector<128x32xf32> -> vector<128x32xf32>
    %36 = arith.addf %34, %35 : vector<128x32xf32>
    %37 = arith.index_cast %c1_i32 : i32 to index
    %c0_24 = arith.constant 0 : index
    %c0_25 = arith.constant 0 : index
    %38 = vector.load %arg6[%37, %c0_24, %c0_25] : memref<4x32x32xf32, #tpu.memory_space<vmem>>, vector<1x32x32xf32>
    %39 = vector.shape_cast %38 : vector<1x32x32xf32> to vector<32x32xf32>
    %cst_26 = arith.constant dense<0.000000e+00> : vector<128x32xf32>
    %40 = tpu.matmul %36, %39, %cst_26 {dimension_numbers = #tpu.dot_dimension_numbers<[1], [0], [0], [1], [0, 0, 1, 1], [], []>} : vector<128x32xf32>, vector<32x32xf32>, vector<128x32xf32> -> vector<128x32xf32>
    %41 = arith.index_cast %c1_i32 : i32 to index
    %c0_27 = arith.constant 0 : index
    %c0_28 = arith.constant 0 : index
    %42 = vector.load %arg7[%41, %c0_27, %c0_28] : memref<4x1x32xf32, #tpu.memory_space<vmem>>, vector<1x1x32xf32>
    %43 = vector.shape_cast %42 : vector<1x1x32xf32> to vector<1x32xf32>
    %44 = vector.broadcast %43 : vector<1x32xf32> to vector<128x32xf32>
    %45 = arith.addf %40, %44 : vector<128x32xf32>
    %cst_29 = arith.constant 0.000000e+00 : f32
    %46 = vector.broadcast %cst_29 : f32 to vector<128x32xf32>
    %47 = arith.maximumf %45, %46 : vector<128x32xf32>
    %48 = arith.index_cast %c1_i32 : i32 to index
    %c0_30 = arith.constant 0 : index
    %c0_31 = arith.constant 0 : index
    %49 = vector.load %arg8[%48, %c0_30, %c0_31] : memref<4x32x32xf32, #tpu.memory_space<vmem>>, vector<1x32x32xf32>
    %50 = vector.shape_cast %49 : vector<1x32x32xf32> to vector<32x32xf32>
    %cst_32 = arith.constant dense<0.000000e+00> : vector<128x32xf32>
    %51 = tpu.matmul %47, %50, %cst_32 {dimension_numbers = #tpu.dot_dimension_numbers<[1], [0], [0], [1], [0, 0, 1, 1], [], []>} : vector<128x32xf32>, vector<32x32xf32>, vector<128x32xf32> -> vector<128x32xf32>
    %52 = arith.index_cast %c1_i32 : i32 to index
    %c0_33 = arith.constant 0 : index
    %c0_34 = arith.constant 0 : index
    %53 = vector.load %arg9[%52, %c0_33, %c0_34] : memref<4x1x32xf32, #tpu.memory_space<vmem>>, vector<1x1x32xf32>
    %54 = vector.shape_cast %53 : vector<1x1x32xf32> to vector<1x32xf32>
    %55 = vector.broadcast %54 : vector<1x32xf32> to vector<128x32xf32>
    %56 = arith.addf %51, %55 : vector<128x32xf32>
    %cst_35 = arith.constant 0.000000e+00 : f32
    %57 = vector.broadcast %cst_35 : f32 to vector<128x32xf32>
    %58 = arith.maximumf %56, %57 : vector<128x32xf32>
    %59 = vector.broadcast %3 : vector<128x1xf32> to vector<128x32xf32>
    %60 = arith.mulf %58, %59 : vector<128x32xf32>
    %61 = arith.addf %60, %7 : vector<128x32xf32>
    %c2_i32 = arith.constant 2 : i32
    %cst_36 = arith.constant dense<0.000000e+00> : vector<128x32xf32>
    %62 = tpu.matmul %1, %61, %cst_36 {dimension_numbers = #tpu.dot_dimension_numbers<[1], [0], [0], [1], [0, 0, 1, 1], [], []>} : vector<128x128xf32>, vector<128x32xf32>, vector<128x32xf32> -> vector<128x32xf32>
    %63 = arith.addf %61, %62 : vector<128x32xf32>
    %64 = arith.index_cast %c2_i32 : i32 to index
    %c0_37 = arith.constant 0 : index
    %c0_38 = arith.constant 0 : index
    %65 = vector.load %arg6[%64, %c0_37, %c0_38] : memref<4x32x32xf32, #tpu.memory_space<vmem>>, vector<1x32x32xf32>
    %66 = vector.shape_cast %65 : vector<1x32x32xf32> to vector<32x32xf32>
    %cst_39 = arith.constant dense<0.000000e+00> : vector<128x32xf32>
    %67 = tpu.matmul %63, %66, %cst_39 {dimension_numbers = #tpu.dot_dimension_numbers<[1], [0], [0], [1], [0, 0, 1, 1], [], []>} : vector<128x32xf32>, vector<32x32xf32>, vector<128x32xf32> -> vector<128x32xf32>
    %68 = arith.index_cast %c2_i32 : i32 to index
    %c0_40 = arith.constant 0 : index
    %c0_41 = arith.constant 0 : index
    %69 = vector.load %arg7[%68, %c0_40, %c0_41] : memref<4x1x32xf32, #tpu.memory_space<vmem>>, vector<1x1x32xf32>
    %70 = vector.shape_cast %69 : vector<1x1x32xf32> to vector<1x32xf32>
    %71 = vector.broadcast %70 : vector<1x32xf32> to vector<128x32xf32>
    %72 = arith.addf %67, %71 : vector<128x32xf32>
    %cst_42 = arith.constant 0.000000e+00 : f32
    %73 = vector.broadcast %cst_42 : f32 to vector<128x32xf32>
    %74 = arith.maximumf %72, %73 : vector<128x32xf32>
    %75 = arith.index_cast %c2_i32 : i32 to index
    %c0_43 = arith.constant 0 : index
    %c0_44 = arith.constant 0 : index
    %76 = vector.load %arg8[%75, %c0_43, %c0_44] : memref<4x32x32xf32, #tpu.memory_space<vmem>>, vector<1x32x32xf32>
    %77 = vector.shape_cast %76 : vector<1x32x32xf32> to vector<32x32xf32>
    %cst_45 = arith.constant dense<0.000000e+00> : vector<128x32xf32>
    %78 = tpu.matmul %74, %77, %cst_45 {dimension_numbers = #tpu.dot_dimension_numbers<[1], [0], [0], [1], [0, 0, 1, 1], [], []>} : vector<128x32xf32>, vector<32x32xf32>, vector<128x32xf32> -> vector<128x32xf32>
    %79 = arith.index_cast %c2_i32 : i32 to index
    %c0_46 = arith.constant 0 : index
    %c0_47 = arith.constant 0 : index
    %80 = vector.load %arg9[%79, %c0_46, %c0_47] : memref<4x1x32xf32, #tpu.memory_space<vmem>>, vector<1x1x32xf32>
    %81 = vector.shape_cast %80 : vector<1x1x32xf32> to vector<1x32xf32>
    %82 = vector.broadcast %81 : vector<1x32xf32> to vector<128x32xf32>
    %83 = arith.addf %78, %82 : vector<128x32xf32>
    %cst_48 = arith.constant 0.000000e+00 : f32
    %84 = vector.broadcast %cst_48 : f32 to vector<128x32xf32>
    %85 = arith.maximumf %83, %84 : vector<128x32xf32>
    %86 = vector.broadcast %3 : vector<128x1xf32> to vector<128x32xf32>
    %87 = arith.mulf %85, %86 : vector<128x32xf32>
    %88 = arith.addf %87, %7 : vector<128x32xf32>
    %c3_i32 = arith.constant 3 : i32
    %cst_49 = arith.constant dense<0.000000e+00> : vector<128x32xf32>
    %89 = tpu.matmul %1, %88, %cst_49 {dimension_numbers = #tpu.dot_dimension_numbers<[1], [0], [0], [1], [0, 0, 1, 1], [], []>} : vector<128x128xf32>, vector<128x32xf32>, vector<128x32xf32> -> vector<128x32xf32>
    %90 = arith.addf %88, %89 : vector<128x32xf32>
    %91 = arith.index_cast %c3_i32 : i32 to index
    %c0_50 = arith.constant 0 : index
    %c0_51 = arith.constant 0 : index
    %92 = vector.load %arg6[%91, %c0_50, %c0_51] : memref<4x32x32xf32, #tpu.memory_space<vmem>>, vector<1x32x32xf32>
    %93 = vector.shape_cast %92 : vector<1x32x32xf32> to vector<32x32xf32>
    %cst_52 = arith.constant dense<0.000000e+00> : vector<128x32xf32>
    %94 = tpu.matmul %90, %93, %cst_52 {dimension_numbers = #tpu.dot_dimension_numbers<[1], [0], [0], [1], [0, 0, 1, 1], [], []>} : vector<128x32xf32>, vector<32x32xf32>, vector<128x32xf32> -> vector<128x32xf32>
    %95 = arith.index_cast %c3_i32 : i32 to index
    %c0_53 = arith.constant 0 : index
    %c0_54 = arith.constant 0 : index
    %96 = vector.load %arg7[%95, %c0_53, %c0_54] : memref<4x1x32xf32, #tpu.memory_space<vmem>>, vector<1x1x32xf32>
    %97 = vector.shape_cast %96 : vector<1x1x32xf32> to vector<1x32xf32>
    %98 = vector.broadcast %97 : vector<1x32xf32> to vector<128x32xf32>
    %99 = arith.addf %94, %98 : vector<128x32xf32>
    %cst_55 = arith.constant 0.000000e+00 : f32
    %100 = vector.broadcast %cst_55 : f32 to vector<128x32xf32>
    %101 = arith.maximumf %99, %100 : vector<128x32xf32>
    %102 = arith.index_cast %c3_i32 : i32 to index
    %c0_56 = arith.constant 0 : index
    %c0_57 = arith.constant 0 : index
    %103 = vector.load %arg8[%102, %c0_56, %c0_57] : memref<4x32x32xf32, #tpu.memory_space<vmem>>, vector<1x32x32xf32>
    %104 = vector.shape_cast %103 : vector<1x32x32xf32> to vector<32x32xf32>
    %cst_58 = arith.constant dense<0.000000e+00> : vector<128x32xf32>
    %105 = tpu.matmul %101, %104, %cst_58 {dimension_numbers = #tpu.dot_dimension_numbers<[1], [0], [0], [1], [0, 0, 1, 1], [], []>} : vector<128x32xf32>, vector<32x32xf32>, vector<128x32xf32> -> vector<128x32xf32>
    %106 = arith.index_cast %c3_i32 : i32 to index
    %c0_59 = arith.constant 0 : index
    %c0_60 = arith.constant 0 : index
    %107 = vector.load %arg9[%106, %c0_59, %c0_60] : memref<4x1x32xf32, #tpu.memory_space<vmem>>, vector<1x1x32xf32>
    %108 = vector.shape_cast %107 : vector<1x1x32xf32> to vector<1x32xf32>
    %109 = vector.broadcast %108 : vector<1x32xf32> to vector<128x32xf32>
    %110 = arith.addf %105, %109 : vector<128x32xf32>
    %cst_61 = arith.constant 0.000000e+00 : f32
    %111 = vector.broadcast %cst_61 : f32 to vector<128x32xf32>
    %112 = arith.maximumf %110, %111 : vector<128x32xf32>
    %113 = vector.broadcast %3 : vector<128x1xf32> to vector<128x32xf32>
    %114 = arith.mulf %112, %113 : vector<128x32xf32>
    %115 = arith.addf %114, %7 : vector<128x32xf32>
    %c4_i32 = arith.constant 4 : i32
    %c0_62 = arith.constant 0 : index
    %c0_63 = arith.constant 0 : index
    %116 = vector.load %arg10[%c0_62, %c0_63] : memref<32x32xf32, #tpu.memory_space<vmem>>, vector<32x32xf32>
    %cst_64 = arith.constant dense<0.000000e+00> : vector<128x32xf32>
    %117 = tpu.matmul %115, %116, %cst_64 {dimension_numbers = #tpu.dot_dimension_numbers<[1], [0], [0], [1], [0, 0, 1, 1], [], []>} : vector<128x32xf32>, vector<32x32xf32>, vector<128x32xf32> -> vector<128x32xf32>
    %c0_65 = arith.constant 0 : index
    %c0_66 = arith.constant 0 : index
    %c0_67 = arith.constant 0 : index
    %118 = vector.load %arg4[%c0_65, %c0_66, %c0_67] : memref<1x16x128xf32, #tpu.memory_space<vmem>>, vector<1x16x128xf32>
    %119 = vector.shape_cast %118 : vector<1x16x128xf32> to vector<16x128xf32>
    %cst_68 = arith.constant dense<0.000000e+00> : vector<16x32xf32>
    %120 = tpu.matmul %119, %117, %cst_68 {dimension_numbers = #tpu.dot_dimension_numbers<[1], [0], [0], [1], [0, 0, 1, 1], [], []>} : vector<16x128xf32>, vector<128x32xf32>, vector<16x32xf32> -> vector<16x32xf32>
    %c0_69 = arith.constant 0 : index
    %c0_70 = arith.constant 0 : index
    %121 = vector.load %arg11[%c0_69, %c0_70] : memref<32x128xf32, #tpu.memory_space<vmem>>, vector<32x128xf32>
    %cst_71 = arith.constant dense<0.000000e+00> : vector<16x128xf32>
    %122 = tpu.matmul %120, %121, %cst_71 {dimension_numbers = #tpu.dot_dimension_numbers<[1], [0], [0], [1], [0, 0, 1, 1], [], []>} : vector<16x32xf32>, vector<32x128xf32>, vector<16x128xf32> -> vector<16x128xf32>
    %c0_72 = arith.constant 0 : index
    %c0_73 = arith.constant 0 : index
    %123 = vector.load %arg12[%c0_72, %c0_73] : memref<1x128xf32, #tpu.memory_space<vmem>>, vector<1x128xf32>
    %124 = vector.broadcast %123 : vector<1x128xf32> to vector<16x128xf32>
    %125 = arith.addf %122, %124 : vector<16x128xf32>
    %c0_74 = arith.constant 0 : index
    %c0_75 = arith.constant 0 : index
    %126 = vector.load %arg13[%c0_74, %c0_75] : memref<16x128xf32, #tpu.memory_space<vmem>>, vector<16x128xf32>
    tpu.vector_store %arg13[%c0_74, %c0_75], %125 {strides = array<i32>} : memref<16x128xf32, #tpu.memory_space<vmem>>, vector<16x128xf32>,
    return
  }
  func.func @transform_0(%arg0: i32) -> (i32, i32, i32) {
    %c0_i32 = arith.constant 0 : i32
    %c0_i32_0 = arith.constant 0 : i32
    %c0_i32_1 = arith.constant 0 : i32
    return %arg0, %c0_i32, %c0_i32_0 : i32, i32, i32
  }
  func.func @transform_1(%arg0: i32) -> (i32, i32, i32) {
    %c0_i32 = arith.constant 0 : i32
    %c0_i32_0 = arith.constant 0 : i32
    %c0_i32_1 = arith.constant 0 : i32
    return %arg0, %c0_i32, %c0_i32_0 : i32, i32, i32
  }
  func.func @transform_2(%arg0: i32) -> (i32, i32, i32) {
    %c0_i32 = arith.constant 0 : i32
    %c0_i32_0 = arith.constant 0 : i32
    %c0_i32_1 = arith.constant 0 : i32
    return %arg0, %c0_i32, %c0_i32_0 : i32, i32, i32
  }
  func.func @transform_3(%arg0: i32) -> (i32, i32, i32) {
    %c0_i32 = arith.constant 0 : i32
    %c0_i32_0 = arith.constant 0 : i32
    %c0_i32_1 = arith.constant 0 : i32
    return %arg0, %c0_i32, %c0_i32_0 : i32, i32, i32
  }
  func.func @transform_4(%arg0: i32) -> (i32, i32) {
    %c0_i32 = arith.constant 0 : i32
    %c0_i32_0 = arith.constant 0 : i32
    %c0_i32_1 = arith.constant 0 : i32
    return %c0_i32, %c0_i32_0 : i32, i32
  }
  func.func @transform_5(%arg0: i32) -> (i32, i32, i32) {
    %c0_i32 = arith.constant 0 : i32
    %c0_i32_0 = arith.constant 0 : i32
    %c0_i32_1 = arith.constant 0 : i32
    %c0_i32_2 = arith.constant 0 : i32
    return %c0_i32, %c0_i32_0, %c0_i32_1 : i32, i32, i32
  }
  func.func @transform_6(%arg0: i32) -> (i32, i32, i32) {
    %c0_i32 = arith.constant 0 : i32
    %c0_i32_0 = arith.constant 0 : i32
    %c0_i32_1 = arith.constant 0 : i32
    %c0_i32_2 = arith.constant 0 : i32
    return %c0_i32, %c0_i32_0, %c0_i32_1 : i32, i32, i32
  }
  func.func @transform_7(%arg0: i32) -> (i32, i32, i32) {
    %c0_i32 = arith.constant 0 : i32
    %c0_i32_0 = arith.constant 0 : i32
    %c0_i32_1 = arith.constant 0 : i32
    %c0_i32_2 = arith.constant 0 : i32
    return %c0_i32, %c0_i32_0, %c0_i32_1 : i32, i32, i32
  }
  func.func @transform_8(%arg0: i32) -> (i32, i32, i32) {
    %c0_i32 = arith.constant 0 : i32
    %c0_i32_0 = arith.constant 0 : i32
    %c0_i32_1 = arith.constant 0 : i32
    %c0_i32_2 = arith.constant 0 : i32
    return %c0_i32, %c0_i32_0, %c0_i32_1 : i32, i32, i32
  }
  func.func @transform_9(%arg0: i32) -> (i32, i32) {
    %c0_i32 = arith.constant 0 : i32
    %c0_i32_0 = arith.constant 0 : i32
    %c0_i32_1 = arith.constant 0 : i32
    return %c0_i32, %c0_i32_0 : i32, i32
  }
  func.func @transform_10(%arg0: i32) -> (i32, i32) {
    %c0_i32 = arith.constant 0 : i32
    %c0_i32_0 = arith.constant 0 : i32
    %c0_i32_1 = arith.constant 0 : i32
    return %c0_i32, %c0_i32_0 : i32, i32
  }
  func.func @transform_11(%arg0: i32) -> (i32, i32) {
    %c0_i32 = arith.constant 0 : i32
    %c0_i32_0 = arith.constant 0 : i32
    %c0_i32_1 = arith.constant 0 : i32
    return %c0_i32, %c0_i32_0 : i32, i32
  }
  func.func @transform_12(%arg0: i32) -> (i32, i32) {
    %c0_i32 = arith.constant 0 : i32
    %c0_i32_0 = arith.constant 0 : i32
    return %arg0, %c0_i32 : i32, i32
  }
}

</mosaic_0001>

<llo_original>
// kernel: tpu_custom_call.1
$region0: #{tpu_custom_call.1}
  #allocation0 [shape = 'u32[]', space=smem, size = 0x4, offset = 0x4, fixed_abs, tag = 'smem constant byte address 0x4 - core index']
  #allocation1 [shape = 'u32[72,128]{1,0:T(1,128)}', space=vmem, size = 0x9000, scoped, tag = 'internal scratch']
  %s0 = inlined_call_operand.vmem [shape: f32[2,128,128], index: 0, kind: input, shape index: {}]
  %s1 = inlined_call_operand.vmem [shape: f32[2,128,8], index: 1, kind: input, shape index: {}]
  %s2 = inlined_call_operand.vmem [shape: f32[2,128,1], index: 2, kind: input, shape index: {}]
  %s3 = inlined_call_operand.hbm [shape: f32[2,16,128], index: 3, kind: input, shape index: {}]
  %s4 = inlined_call_operand.vmem [shape: f32[8,32], index: 4, kind: input, shape index: {}]
  %s5 = inlined_call_operand.vmem [shape: f32[4,32,32], index: 5, kind: input, shape index: {}]
  %s6 = inlined_call_operand.vmem [shape: f32[4,1,32], index: 6, kind: input, shape index: {}]
  %s7 = inlined_call_operand.vmem [shape: f32[4,32,32], index: 7, kind: input, shape index: {}]
  %s8 = inlined_call_operand.vmem [shape: f32[4,1,32], index: 8, kind: input, shape index: {}]
  %s9 = inlined_call_operand.hbm [shape: f32[32,32], index: 9, kind: input, shape index: {}]
  %s10 = inlined_call_operand.hbm [shape: f32[32,128], index: 10, kind: input, shape index: {}]
  %s11 = inlined_call_operand.vmem [shape: f32[1,128], index: 11, kind: input, shape index: {}]
  %s12 = inlined_call_operand.hbm [shape: f32[32,128], index: 12, kind: output, shape index: {}]
  %s13 = sld [smem:[#allocation0]]
  $region93: #{tpu_custom_call.1} parent=0
    _
  %s15 = ssub.s32 1, %s13
  %s16 = scalar_select 0, %s15, %s13
  $region1: #{tpu_custom_call.1} parent=0
    #allocation2 [shape = 'u8[16384]{0}', space=vmem, size = 0x4000, scoped, tag = 'input window, operand 3']
    #allocation3 [shape = 's32[2]{0}', space=sflag, size = 0x8, scoped, tag = 'scoped memory for tpu_custom_call.1']
    #allocation4 [shape = 's32[2]{0}', space=sflag, size = 0x8, scoped, tag = 'scoped memory for tpu_custom_call.1']
    #allocation5 [shape = 'u8[16384]{0}', space=vmem, size = 0x4000, scoped, tag = 'input window, operand 9, single buffered']
    #allocation6 [shape = 's32[1]{0}', space=sflag, size = 0x4, scoped, tag = 'scoped memory for tpu_custom_call.1']
    #allocation7 [shape = 'u8[16384]{0}', space=vmem, size = 0x4000, scoped, tag = 'input window, operand 10, single buffered']
    #allocation8 [shape = 'u8[16384]{0}', space=vmem, size = 0x4000, scoped, tag = 'output window, operand 0']
    %17 = vsyncpa [#allocation3], 0
    %s18 = scalar_lea.sflag [#allocation3], 1
    %19 = vsyncpa %s18, 0
    %20 = vsyncpa [#allocation6], 0
    %21 = vsyncpa [#allocation4], 0
    %s22 = scalar_lea.sflag [#allocation4], 1
    %23 = vsyncpa %s22, 0
    loop: start=0, step=1, limit=4
    $region2: #{tpu_custom_call.1} parent=1 // loop_pre_header
      _
    $region3: #{tpu_custom_call.1} parent=1 // loop_header
      %s25 = sphi 0, %s29
      %p26 = scmp.ge.s32.totalorder %s25, 4
      %s35 = sphi 0, %s37
      %s38 = sphi 0, %s35
      %s39 = sphi 0, %s38
      %s55 = sphi 0, %s39
      %s61 = sphi 0, %s63
      %s64 = sphi 0, %s61
      %s65 = sphi 0, %s64
      %s81 = sphi 0, %s65
      %s87 = sphi 0, %s89
      %s90 = sphi 0, %s87
      %s91 = sphi 0, %s90
      %s107 = sphi 0, %s91
      %s113 = sphi 0, %s115
      %s116 = sphi 0, %s113
      %s117 = sphi 0, %s116
      %s133 = sphi 0, %s117
      %s137 = sphi 0, %s137
      %s139 = sphi 0, %s137
      %s140 = sphi 0, %s139
      %s154 = sphi 0, %s140
      %s158 = sphi 0, %s158
      %s160 = sphi 0, %s158
      %s161 = sphi 0, %s160
      %s175 = sphi 0, %s161
      %s179 = sphi 0, %s179
      %s181 = sphi 0, %s179
      %s182 = sphi 0, %s181
      %s196 = sphi 0, %s182
      %s200 = sphi 0, %s200
      %s202 = sphi 0, %s200
      %s203 = sphi 0, %s202
      %s217 = sphi 0, %s203
      %s221 = sphi 0, %s221
      %s223 = sphi 0, %s221
      %s224 = sphi 0, %s223
      %s238 = sphi 0, %s224
      %s242 = sphi 0, %s242
      %s244 = sphi 0, %s242
      %s245 = sphi 0, %s244
      %s259 = sphi 0, %s245
      %s263 = sphi 0, %s263
      %s265 = sphi 0, %s263
      %s266 = sphi 0, %s265
      %s280 = sphi 0, %s266
      %s284 = sphi 0, %s284
      %s286 = sphi 0, %s284
      %s287 = sphi 0, %s286
      %s301 = sphi 0, %s287
      %s307 = sphi 0, %s309
      %s310 = sphi 0, %s307
      %s311 = sphi 0, %s310
      %s327 = sphi 0, %s311
    $region4: #{tpu_custom_call.1} parent=1 // loop_header_branch
      %28 = sbr.rel (%p26) target = $region8
    $region5: #{tpu_custom_call.1} parent=1 // loop_body
      %s30 = ssub.s32 %s25, 1
      %s31 = ssub.s32 %s25, 2
      %s32 = sadd.s32 %s25, 1
      %s33 = ssub.s32 %s25, %s32
      %p34 = scmp.eq.s32.totalorder %s33, 0
      %s36 = sadd.s32 %s35, 1
      %s37 = scalar_select %p34, %s35, %s36
      %p40 = pneg %p34
      %p41 = scmp.eq.s32.totalorder %s25, 1
      %p42 = por %p40, %p41
      %p43 = scmp.ne.s32.totalorder %s35, %s38
      %p44 = scmp.eq.s32.totalorder %s25, 0
      %p45 = por %p43, %p44
      %p46 = scmp.ne.s32.totalorder %s35, %s38
      %p47 = scmp.eq.s32.totalorder %s30, 1
      %p48 = por %p46, %p47
      %p49 = scmp.ne.s32.totalorder %s38, %s39
      %p50 = scmp.eq.s32.totalorder %s30, 0
      %p51 = por %p49, %p50
      %p52 = scmp.ne.s32.totalorder %s38, %s39
      %p53 = scmp.eq.s32.totalorder %s31, 1
      %p54 = por %p52, %p53
      %p56 = scmp.ne.s32.totalorder %s39, %s55
      %p57 = scmp.eq.s32.totalorder %s31, 0
      %p58 = por %p56, %p57
      %s59 = ssub.s32 %s25, %s32
      %p60 = scmp.eq.s32.totalorder %s59, 0
      %s62 = sadd.s32 %s61, 1
      %s63 = scalar_select %p60, %s61, %s62
      %p66 = pneg %p60
      %p67 = scmp.eq.s32.totalorder %s25, 1
      %p68 = por %p66, %p67
      %p69 = scmp.ne.s32.totalorder %s61, %s64
      %p70 = scmp.eq.s32.totalorder %s25, 0
      %p71 = por %p69, %p70
      %p72 = scmp.ne.s32.totalorder %s61, %s64
      %p73 = scmp.eq.s32.totalorder %s30, 1
      %p74 = por %p72, %p73
      %p75 = scmp.ne.s32.totalorder %s64, %s65
      %p76 = scmp.eq.s32.totalorder %s30, 0
      %p77 = por %p75, %p76
      %p78 = scmp.ne.s32.totalorder %s64, %s65
      %p79 = scmp.eq.s32.totalorder %s31, 1
      %p80 = por %p78, %p79
      %p82 = scmp.ne.s32.totalorder %s65, %s81
      %p83 = scmp.eq.s32.totalorder %s31, 0
      %p84 = por %p82, %p83
      %s85 = ssub.s32 %s25, %s32
      %p86 = scmp.eq.s32.totalorder %s85, 0
      %s88 = sadd.s32 %s87, 1
      %s89 = scalar_select %p86, %s87, %s88
      %p92 = pneg %p86
      %p93 = scmp.eq.s32.totalorder %s25, 1
      %p94 = por %p92, %p93
      %p95 = scmp.ne.s32.totalorder %s87, %s90
      %p96 = scmp.eq.s32.totalorder %s25, 0
      %p97 = por %p95, %p96
      %p98 = scmp.ne.s32.totalorder %s87, %s90
      %p99 = scmp.eq.s32.totalorder %s30, 1
      %p100 = por %p98, %p99
      %p101 = scmp.ne.s32.totalorder %s90, %s91
      %p102 = scmp.eq.s32.totalorder %s30, 0
      %p103 = por %p101, %p102
      %p104 = scmp.ne.s32.totalorder %s90, %s91
      %p105 = scmp.eq.s32.totalorder %s31, 1
      %p106 = por %p104, %p105
      %p108 = scmp.ne.s32.totalorder %s91, %s107
      %p109 = scmp.eq.s32.totalorder %s31, 0
      %p110 = por %p108, %p109
      %s111 = ssub.s32 %s25, %s32
      %p112 = scmp.eq.s32.totalorder %s111, 0
      %s114 = sadd.s32 %s113, 1
      %s115 = scalar_select %p112, %s113, %s114
      %p118 = pneg %p112
      %p119 = scmp.eq.s32.totalorder %s25, 1
      %p120 = por %p118, %p119
      %p121 = scmp.ne.s32.totalorder %s113, %s116
      %p122 = scmp.eq.s32.totalorder %s25, 0
      %p123 = por %p121, %p122
      %p124 = scmp.ne.s32.totalorder %s113, %s116
      %p125 = scmp.eq.s32.totalorder %s30, 1
      %p126 = por %p124, %p125
      %p127 = scmp.ne.s32.totalorder %s116, %s117
      %p128 = scmp.eq.s32.totalorder %s30, 0
      %p129 = por %p127, %p128
      %p130 = scmp.ne.s32.totalorder %s116, %s117
      %p131 = scmp.eq.s32.totalorder %s31, 1
      %p132 = por %p130, %p131
      %p134 = scmp.ne.s32.totalorder %s117, %s133
      %p135 = scmp.eq.s32.totalorder %s31, 0
      %p136 = por %p134, %p135
      %s138 = sadd.s32 %s137, 1
      %p141 = scmp.eq.s32.totalorder %s25, 1
      %p142 = scmp.ne.s32.totalorder %s137, %s139
      %p143 = scmp.eq.s32.totalorder %s25, 0
      %p144 = por %p142, %p143
      %p145 = scmp.ne.s32.totalorder %s137, %s139
      %p146 = scmp.eq.s32.totalorder %s30, 1
      %p147 = por %p145, %p146
      %p148 = scmp.ne.s32.totalorder %s139, %s140
      %p149 = scmp.eq.s32.totalorder %s30, 0
      %p150 = por %p148, %p149
      %p151 = scmp.ne.s32.totalorder %s139, %s140
      %p152 = scmp.eq.s32.totalorder %s31, 1
      %p153 = por %p151, %p152
      %p155 = scmp.ne.s32.totalorder %s140, %s154
      %p156 = scmp.eq.s32.totalorder %s31, 0
      %p157 = por %p155, %p156
      %s159 = sadd.s32 %s158, 1
      %p162 = scmp.eq.s32.totalorder %s25, 1
      %p163 = scmp.ne.s32.totalorder %s158, %s160
      %p164 = scmp.eq.s32.totalorder %s25, 0
      %p165 = por %p163, %p164
      %p166 = scmp.ne.s32.totalorder %s158, %s160
      %p167 = scmp.eq.s32.totalorder %s30, 1
      %p168 = por %p166, %p167
      %p169 = scmp.ne.s32.totalorder %s160, %s161
      %p170 = scmp.eq.s32.totalorder %s30, 0
      %p171 = por %p169, %p170
      %p172 = scmp.ne.s32.totalorder %s160, %s161
      %p173 = scmp.eq.s32.totalorder %s31, 1
      %p174 = por %p172, %p173
      %p176 = scmp.ne.s32.totalorder %s161, %s175
      %p177 = scmp.eq.s32.totalorder %s31, 0
      %p178 = por %p176, %p177
      %s180 = sadd.s32 %s179, 1
      %p183 = scmp.eq.s32.totalorder %s25, 1
      %p184 = scmp.ne.s32.totalorder %s179, %s181
      %p185 = scmp.eq.s32.totalorder %s25, 0
      %p186 = por %p184, %p185
      %p187 = scmp.ne.s32.totalorder %s179, %s181
      %p188 = scmp.eq.s32.totalorder %s30, 1
      %p189 = por %p187, %p188
      %p190 = scmp.ne.s32.totalorder %s181, %s182
      %p191 = scmp.eq.s32.totalorder %s30, 0
      %p192 = por %p190, %p191
      %p193 = scmp.ne.s32.totalorder %s181, %s182
      %p194 = scmp.eq.s32.totalorder %s31, 1
      %p195 = por %p193, %p194
      %p197 = scmp.ne.s32.totalorder %s182, %s196
      %p198 = scmp.eq.s32.totalorder %s31, 0
      %p199 = por %p197, %p198
      %s201 = sadd.s32 %s200, 1
      %p204 = scmp.eq.s32.totalorder %s25, 1
      %p205 = scmp.ne.s32.totalorder %s200, %s202
      %p206 = scmp.eq.s32.totalorder %s25, 0
      %p207 = por %p205, %p206
      %p208 = scmp.ne.s32.totalorder %s200, %s202
      %p209 = scmp.eq.s32.totalorder %s30, 1
      %p210 = por %p208, %p209
      %p211 = scmp.ne.s32.totalorder %s202, %s203
      %p212 = scmp.eq.s32.totalorder %s30, 0
      %p213 = por %p211, %p212
      %p214 = scmp.ne.s32.totalorder %s202, %s203
      %p215 = scmp.eq.s32.totalorder %s31, 1
      %p216 = por %p214, %p215
      %p218 = scmp.ne.s32.totalorder %s203, %s217
      %p219 = scmp.eq.s32.totalorder %s31, 0
      %p220 = por %p218, %p219
      %s222 = sadd.s32 %s221, 1
      %p225 = scmp.eq.s32.totalorder %s25, 1
      %p226 = scmp.ne.s32.totalorder %s221, %s223
      %p227 = scmp.eq.s32.totalorder %s25, 0
      %p228 = por %p226, %p227
      %p229 = scmp.ne.s32.totalorder %s221, %s223
      %p230 = scmp.eq.s32.totalorder %s30, 1
      %p231 = por %p229, %p230
      %p232 = scmp.ne.s32.totalorder %s223, %s224
      %p233 = scmp.eq.s32.totalorder %s30, 0
      %p234 = por %p232, %p233
      %p235 = scmp.ne.s32.totalorder %s223, %s224
      %p236 = scmp.eq.s32.totalorder %s31, 1
      %p237 = por %p235, %p236
      %p239 = scmp.ne.s32.totalorder %s224, %s238
      %p240 = scmp.eq.s32.totalorder %s31, 0
      %p241 = por %p239, %p240
      %s243 = sadd.s32 %s242, 1
      %p246 = scmp.eq.s32.totalorder %s25, 1
      %p247 = scmp.ne.s32.totalorder %s242, %s244
      %p248 = scmp.eq.s32.totalorder %s25, 0
      %p249 = por %p247, %p248
      %p250 = scmp.ne.s32.totalorder %s242, %s244
      %p251 = scmp.eq.s32.totalorder %s30, 1
      %p252 = por %p250, %p251
      %p253 = scmp.ne.s32.totalorder %s244, %s245
      %p254 = scmp.eq.s32.totalorder %s30, 0
      %p255 = por %p253, %p254
      %p256 = scmp.ne.s32.totalorder %s244, %s245
      %p257 = scmp.eq.s32.totalorder %s31, 1
      %p258 = por %p256, %p257
      %p260 = scmp.ne.s32.totalorder %s245, %s259
      %p261 = scmp.eq.s32.totalorder %s31, 0
      %p262 = por %p260, %p261
      %s264 = sadd.s32 %s263, 1
      %p267 = scmp.eq.s32.totalorder %s25, 1
      %p268 = scmp.ne.s32.totalorder %s263, %s265
      %p269 = scmp.eq.s32.totalorder %s25, 0
      %p270 = por %p268, %p269
      %p271 = scmp.ne.s32.totalorder %s263, %s265
      %p272 = scmp.eq.s32.totalorder %s30, 1
      %p273 = por %p271, %p272
      %p274 = scmp.ne.s32.totalorder %s265, %s266
      %p275 = scmp.eq.s32.totalorder %s30, 0
      %p276 = por %p274, %p275
      %p277 = scmp.ne.s32.totalorder %s265, %s266
      %p278 = scmp.eq.s32.totalorder %s31, 1
      %p279 = por %p277, %p278
      %p281 = scmp.ne.s32.totalorder %s266, %s280
      %p282 = scmp.eq.s32.totalorder %s31, 0
      %p283 = por %p281, %p282
      %s285 = sadd.s32 %s284, 1
      %p288 = scmp.eq.s32.totalorder %s25, 1
      %p289 = scmp.ne.s32.totalorder %s284, %s286
      %p290 = scmp.eq.s32.totalorder %s25, 0
      %p291 = por %p289, %p290
      %p292 = scmp.ne.s32.totalorder %s284, %s286
      %p293 = scmp.eq.s32.totalorder %s30, 1
      %p294 = por %p292, %p293
      %p295 = scmp.ne.s32.totalorder %s286, %s287
      %p296 = scmp.eq.s32.totalorder %s30, 0
      %p297 = por %p295, %p296
      %p298 = scmp.ne.s32.totalorder %s286, %s287
      %p299 = scmp.eq.s32.totalorder %s31, 1
      %p300 = por %p298, %p299
      %p302 = scmp.ne.s32.totalorder %s287, %s301
      %p303 = scmp.eq.s32.totalorder %s31, 0
      %p304 = por %p302, %p303
      %s305 = ssub.s32 %s25, %s32
      %p306 = scmp.eq.s32.totalorder %s305, 0
      %s308 = sadd.s32 %s307, 1
      %s309 = scalar_select %p306, %s307, %s308
      %p312 = pneg %p306
      %p313 = scmp.eq.s32.totalorder %s25, 1
      %p314 = por %p312, %p313
      %p315 = scmp.ne.s32.totalorder %s307, %s310
      %p316 = scmp.eq.s32.totalorder %s25, 0
      %p317 = por %p315, %p316
      %p318 = scmp.ne.s32.totalorder %s307, %s310
      %p319 = scmp.eq.s32.totalorder %s30, 1
      %p320 = por %p318, %p319
      %p321 = scmp.ne.s32.totalorder %s310, %s311
      %p322 = scmp.eq.s32.totalorder %s30, 0
      %p323 = por %p321, %p322
      %p324 = scmp.ne.s32.totalorder %s310, %s311
      %p325 = scmp.eq.s32.totalorder %s31, 1
      %p326 = por %p324, %p325
      %p328 = scmp.ne.s32.totalorder %s311, %s327
      %p329 = scmp.eq.s32.totalorder %s31, 0
      %p330 = por %p328, %p329
      %p331 = scmp.le.s32.totalorder 1, %s25
      %p332 = scmp.lt.s32.totalorder %s25, 3
      %p333 = pnand %p331, %p332
      %p334 = pneg %p333
      // Predicated region
      $region9: #{tpu_custom_call.1} parent=5 // pred_check
        _
      $region10: #{tpu_custom_call.1} parent=5 // pred_check_branch
        %336 = sbr.rel (%p333) target = $region12
      $region11: #{tpu_custom_call.1} parent=5 // pred_region
        %s337 = ssub.s32 %s25, 1
        // Predicated region
        $region13: #{tpu_custom_call.1} parent=11 // pred_check
          %p338 = pneg %p150
        $region14: #{tpu_custom_call.1} parent=11 // pred_check_branch
          %340 = sbr.rel (%p338) target = $region16
        $region15: #{tpu_custom_call.1} parent=11 // pred_region
          _
        $region16: #{tpu_custom_call.1} parent=11 // pred_fallthru
          _
        // Predicated region
        $region17: #{tpu_custom_call.1} parent=11 // pred_check
          %p341 = pneg %p171
        $region18: #{tpu_custom_call.1} parent=11 // pred_check_branch
          %343 = sbr.rel (%p341) target = $region20
        $region19: #{tpu_custom_call.1} parent=11 // pred_region
          _
        $region20: #{tpu_custom_call.1} parent=11 // pred_fallthru
          _
        // Predicated region
        $region21: #{tpu_custom_call.1} parent=11 // pred_check
          %p344 = pneg %p192
        $region22: #{tpu_custom_call.1} parent=11 // pred_check_branch
          %346 = sbr.rel (%p344) target = $region24
        $region23: #{tpu_custom_call.1} parent=11 // pred_region
          _
        $region24: #{tpu_custom_call.1} parent=11 // pred_fallthru
          _
        // Predicated region
        $region25: #{tpu_custom_call.1} parent=11 // pred_check
          %p347 = pneg %p213
        $region26: #{tpu_custom_call.1} parent=11 // pred_check_branch
          %349 = sbr.rel (%p347) target = $region28
        $region27: #{tpu_custom_call.1} parent=11 // pred_region
          _
        $region28: #{tpu_custom_call.1} parent=11 // pred_fallthru
          _
        // Predicated region
        $region29: #{tpu_custom_call.1} parent=11 // pred_check
          %p350 = pneg %p234
        $region30: #{tpu_custom_call.1} parent=11 // pred_check_branch
          %352 = sbr.rel (%p350) target = $region32
        $region31: #{tpu_custom_call.1} parent=11 // pred_region
          _
        $region32: #{tpu_custom_call.1} parent=11 // pred_fallthru
          _
        // Predicated region
        $region33: #{tpu_custom_call.1} parent=11 // pred_check
          %p353 = pneg %p255
        $region34: #{tpu_custom_call.1} parent=11 // pred_check_branch
          %355 = sbr.rel (%p353) target = $region36
        $region35: #{tpu_custom_call.1} parent=11 // pred_region
          %357 = vsyncadd [#allocation6], 0
          %s358 = sshll.u32 %s9, 4
          %s359 = int_to_ptr.hbm [resolvable:$true] %s358
          %s360 = sshll.u32 [#allocation5], 4
          %s361 = int_to_ptr.vmem [resolvable:$true] %s360
          %366 = dma.hbm_to_vmem [thread:$0]  %s359, 512, %s361, [#allocation6], 128, 128, 8
        $region36: #{tpu_custom_call.1} parent=11 // pred_fallthru
          _
        // Predicated region
        $region37: #{tpu_custom_call.1} parent=11 // pred_check
          %p367 = pneg %p276
        $region38: #{tpu_custom_call.1} parent=11 // pred_check_branch
          %369 = sbr.rel (%p367) target = $region40
        $region39: #{tpu_custom_call.1} parent=11 // pred_region
          %371 = vsyncadd [#allocation6], 0
          %s372 = sshll.u32 %s10, 4
          %s373 = int_to_ptr.hbm [resolvable:$true] %s372
          %s374 = sshll.u32 [#allocation7], 4
          %s375 = int_to_ptr.vmem [resolvable:$true] %s374
          %380 = dma.hbm_to_vmem [thread:$0]  %s373, 512, %s375, [#allocation6], 128, 128, 8
        $region40: #{tpu_custom_call.1} parent=11 // pred_fallthru
          _
        // Predicated region
        $region41: #{tpu_custom_call.1} parent=11 // pred_check
          %p381 = pneg %p297
        $region42: #{tpu_custom_call.1} parent=11 // pred_check_branch
          %383 = sbr.rel (%p381) target = $region44
        $region43: #{tpu_custom_call.1} parent=11 // pred_region
          _
        $region44: #{tpu_custom_call.1} parent=11 // pred_fallthru
          _
      $region12: #{tpu_custom_call.1} parent=5 // pred_fallthru
        _
      %p384 = scmp.lt.s32.totalorder %s25, 2
      // Predicated region
      $region45: #{tpu_custom_call.1} parent=5 // pred_check
        %p385 = pneg %p384
      $region46: #{tpu_custom_call.1} parent=5 // pred_check_branch
        %387 = sbr.rel (%p385) target = $region48
      $region47: #{tpu_custom_call.1} parent=5 // pred_region
        // Predicated region
        $region49: #{tpu_custom_call.1} parent=47 // pred_check
          %p388 = pneg %p45
        $region50: #{tpu_custom_call.1} parent=47 // pred_check_branch
          %390 = sbr.rel (%p388) target = $region52
        $region51: #{tpu_custom_call.1} parent=47 // pred_region
          %p391 = scmp.lt.s32.totalorder %s25, 1
          %s392 = scalar_select %p391, %s25, 1
          %s393 = smul.addr %s392, 16
          %s394 = smul.addr %s393, 8
          %s395 = scalar_lea.vmem %s0, %s394
        $region52: #{tpu_custom_call.1} parent=47 // pred_fallthru
          _
        // Predicated region
        $region53: #{tpu_custom_call.1} parent=47 // pred_check
          %p396 = pneg %p71
        $region54: #{tpu_custom_call.1} parent=47 // pred_check_branch
          %398 = sbr.rel (%p396) target = $region56
        $region55: #{tpu_custom_call.1} parent=47 // pred_region
          %p399 = scmp.lt.s32.totalorder %s25, 1
          %s400 = scalar_select %p399, %s25, 1
          %s401 = smul.addr %s400, 16
          %s402 = smul.addr %s401, 8
          %s403 = scalar_lea.vmem %s1, %s402
        $region56: #{tpu_custom_call.1} parent=47 // pred_fallthru
          _
        // Predicated region
        $region57: #{tpu_custom_call.1} parent=47 // pred_check
          %p404 = pneg %p97
        $region58: #{tpu_custom_call.1} parent=47 // pred_check_branch
          %406 = sbr.rel (%p404) target = $region60
        $region59: #{tpu_custom_call.1} parent=47 // pred_region
          %p407 = scmp.lt.s32.totalorder %s25, 1
          %s408 = scalar_select %p407, %s25, 1
          %s409 = smul.addr %s408, 16
          %s410 = smul.addr %s409, 8
          %s411 = scalar_lea.vmem %s2, %s410
        $region60: #{tpu_custom_call.1} parent=47 // pred_fallthru
          _
        // Predicated region
        $region61: #{tpu_custom_call.1} parent=47 // pred_check
          %p412 = pneg %p123
        $region62: #{tpu_custom_call.1} parent=47 // pred_check_branch
          %414 = sbr.rel (%p412) target = $region64
        $region63: #{tpu_custom_call.1} parent=47 // pred_region
          %s415 = sand.u32 %s113, 1
          %s416 = scalar_lea.sflag [#allocation3], %s415
          %s417 = sand.u32 %s113, 1
          %s418 = smul.addr %s417, 16
          %s419 = scalar_lea.vmem [#allocation2], %s418
          %421 = vsyncadd %s416, 0
          %s422 = smul.addr %s25, 2
          %s423 = smul.addr %s422, 8
          %s424 = scalar_lea.hbm %s3, %s423
          %s425 = sshll.u32 %s424, 4
          %s426 = int_to_ptr.hbm [resolvable:$true] %s425
          %s427 = sshll.u32 %s419, 4
          %s428 = int_to_ptr.vmem [resolvable:$true] %s427
          %433 = dma.hbm_to_vmem [thread:$0]  %s426, 256, %s428, %s416, 128, 128, 8
        $region64: #{tpu_custom_call.1} parent=47 // pred_fallthru
          _
      $region48: #{tpu_custom_call.1} parent=5 // pred_fallthru
        _
      %p434 = scmp.le.s32.totalorder 1, %s25
      %p435 = scmp.lt.s32.totalorder %s25, 3
      %p436 = pnand %p434, %p435
      %p437 = pneg %p436
      // Predicated region
      $region65: #{tpu_custom_call.1} parent=5 // pred_check
        _
      $region66: #{tpu_custom_call.1} parent=5 // pred_check_branch
        %439 = sbr.rel (%p436) target = $region68
      $region67: #{tpu_custom_call.1} parent=5 // pred_region
        %s440 = ssub.s32 %s25, 1
        %s441 = sand.u32 %s116, 1
        %s442 = scalar_lea.sflag [#allocation3], %s441
        %s443 = sand.u32 %s116, 1
        %s444 = smul.addr %s443, 16
        %s445 = scalar_lea.vmem [#allocation2], %s444
        // Predicated region
        $region69: #{tpu_custom_call.1} parent=67 // pred_check
          %p446 = pneg %p129
        $region70: #{tpu_custom_call.1} parent=67 // pred_check_branch
          %448 = sbr.rel (%p446) target = $region72
        $region71: #{tpu_custom_call.1} parent=67 // pred_region
          %450 = dma.done %s442, 256
        $region72: #{tpu_custom_call.1} parent=67 // pred_fallthru
          _
        // Predicated region
        $region73: #{tpu_custom_call.1} parent=67 // pred_check
          %p451 = pneg %p255
        $region74: #{tpu_custom_call.1} parent=67 // pred_check_branch
          %453 = sbr.rel (%p451) target = $region76
        $region75: #{tpu_custom_call.1} parent=67 // pred_region
          %455 = dma.done [#allocation6], 512
        $region76: #{tpu_custom_call.1} parent=67 // pred_fallthru
          _
        // Predicated region
        $region77: #{tpu_custom_call.1} parent=67 // pred_check
          %p456 = pneg %p276
        $region78: #{tpu_custom_call.1} parent=67 // pred_check_branch
          %458 = sbr.rel (%p456) target = $region80
        $region79: #{tpu_custom_call.1} parent=67 // pred_region
          %460 = dma.done [#allocation6], 512
        $region80: #{tpu_custom_call.1} parent=67 // pred_fallthru
          _
        %p461 = scmp.lt.s32.totalorder %s30, 1
        %s462 = scalar_select %p461, %s30, 1
        %s463 = smul.addr %s462, 16
        %s464 = smul.addr %s463, 8
        %s465 = scalar_lea.vmem %s0, %s464
        %p466 = pneg %p51
        %p467 = pneg %p48
        %p468 = scmp.lt.s32.totalorder %s30, 1
        %s469 = scalar_select %p468, %s30, 1
        %s470 = smul.addr %s469, 16
        %s471 = smul.addr %s470, 8
        %s472 = scalar_lea.vmem %s1, %s471
        %p473 = pneg %p77
        %p474 = pneg %p74
        %p475 = scmp.lt.s32.totalorder %s30, 1
        %s476 = scalar_select %p475, %s30, 1
        %s477 = smul.addr %s476, 16
        %s478 = smul.addr %s477, 8
        %s479 = scalar_lea.vmem %s2, %s478
        %p480 = pneg %p103
        %p481 = pneg %p100
        %s482 = sand.u32 %s116, 1
        %s483 = scalar_lea.sflag [#allocation3], %s482
        %s484 = sand.u32 %s116, 1
        %s485 = smul.addr %s484, 16
        %s486 = scalar_lea.vmem [#allocation2], %s485
        %p487 = pneg %p129
        %p488 = pneg %p126
        %p489 = pneg %p150
        %p490 = pneg %p147
        %p491 = pneg %p171
        %p492 = pneg %p168
        %p493 = pneg %p192
        %p494 = pneg %p189
        %p495 = pneg %p213
        %p496 = pneg %p210
        %p497 = pneg %p234
        %p498 = pneg %p231
        %p499 = pneg %p255
        %p500 = pneg %p252
        %p501 = pneg %p276
        %p502 = pneg %p273
        %p503 = pneg %p297
        %p504 = pneg %p294
        %p505 = pneg %p323
        %p506 = pneg %p320
        %s507 = sand.u32 %s310, 1
        %s508 = scalar_lea.sflag [#allocation4], %s507
        %s509 = sand.u32 %s310, 1
        %s510 = smul.addr %s509, 16
        %s511 = scalar_lea.vmem [#allocation8], %s510
        %p512 = scmp.lt.s32.totalorder %s30, 1
        %s513 = scalar_select %p512, %s30, 1
        %s514 = smul.addr %s513, 16
        %s515 = smul.addr %s514, 8
        %s516 = scalar_lea.vmem %s0, %s515
        %p517 = scmp.lt.s32.totalorder %s30, 1
        %s518 = scalar_select %p517, %s30, 1
        %s519 = smul.addr %s518, 16
        %s520 = smul.addr %s519, 8
        %s521 = scalar_lea.vmem %s1, %s520
        %p522 = scmp.lt.s32.totalorder %s30, 1
        %s523 = scalar_select %p522, %s30, 1
        %s524 = smul.addr %s523, 16
        %s525 = smul.addr %s524, 8
        %s526 = scalar_lea.vmem %s2, %s525
        %s527 = smul.u32 2, %s30
        %v528 = vld [vmem:[%s516] sm:$0xff]
        %v529 = vld [vmem:[%s516 + $0x8] sm:$0xff]
        %v530 = vld [vmem:[%s516 + $0x10] sm:$0xff]
        %v531 = vld [vmem:[%s516 + $0x18] sm:$0xff]
        %v532 = vld [vmem:[%s516 + $0x20] sm:$0xff]
        %v533 = vld [vmem:[%s516 + $0x28] sm:$0xff]
        %v534 = vld [vmem:[%s516 + $0x30] sm:$0xff]
        %v535 = vld [vmem:[%s516 + $0x38] sm:$0xff]
        %v536 = vld [vmem:[%s516 + $0x40] sm:$0xff]
        %v537 = vld [vmem:[%s516 + $0x48] sm:$0xff]
        %v538 = vld [vmem:[%s516 + $0x50] sm:$0xff]
        %v539 = vld [vmem:[%s516 + $0x58] sm:$0xff]
        %v540 = vld [vmem:[%s516 + $0x60] sm:$0xff]
        %v541 = vld [vmem:[%s516 + $0x68] sm:$0xff]
        %v542 = vld [vmem:[%s516 + $0x70] sm:$0xff]
        %v543 = vld [vmem:[%s516 + $0x78] sm:$0xff]
        %v544 = vld [vmem:[%s526] sm:$0xff]
        %v545 = vld [vmem:[%s526 + $0x8] sm:$0xff]
        %v546 = vld [vmem:[%s526 + $0x10] sm:$0xff]
        %v547 = vld [vmem:[%s526 + $0x18] sm:$0xff]
        %v548 = vld [vmem:[%s526 + $0x20] sm:$0xff]
        %v549 = vld [vmem:[%s526 + $0x28] sm:$0xff]
        %v550 = vld [vmem:[%s526 + $0x30] sm:$0xff]
        %v551 = vld [vmem:[%s526 + $0x38] sm:$0xff]
        %v552 = vld [vmem:[%s526 + $0x40] sm:$0xff]
        %v553 = vld [vmem:[%s526 + $0x48] sm:$0xff]
        %v554 = vld [vmem:[%s526 + $0x50] sm:$0xff]
        %v555 = vld [vmem:[%s526 + $0x58] sm:$0xff]
        %v556 = vld [vmem:[%s526 + $0x60] sm:$0xff]
        %v557 = vld [vmem:[%s526 + $0x68] sm:$0xff]
        %v558 = vld [vmem:[%s526 + $0x70] sm:$0xff]
        %v559 = vld [vmem:[%s526 + $0x78] sm:$0xff]
        %v560 = vld [vmem:[%s521] sm:$0xff]
        %v561 = vld [vmem:[%s521 + $0x8] sm:$0xff]
        %v562 = vld [vmem:[%s521 + $0x10] sm:$0xff]
        %v563 = vld [vmem:[%s521 + $0x18] sm:$0xff]
        %v564 = vld [vmem:[%s521 + $0x20] sm:$0xff]
        %v565 = vld [vmem:[%s521 + $0x28] sm:$0xff]
        %v566 = vld [vmem:[%s521 + $0x30] sm:$0xff]
        %v567 = vld [vmem:[%s521 + $0x38] sm:$0xff]
        %v568 = vld [vmem:[%s521 + $0x40] sm:$0xff]
        %v569 = vld [vmem:[%s521 + $0x48] sm:$0xff]
        %v570 = vld [vmem:[%s521 + $0x50] sm:$0xff]
        %v571 = vld [vmem:[%s521 + $0x58] sm:$0xff]
        %v572 = vld [vmem:[%s521 + $0x60] sm:$0xff]
        %v573 = vld [vmem:[%s521 + $0x68] sm:$0xff]
        %v574 = vld [vmem:[%s521 + $0x70] sm:$0xff]
        %v575 = vld [vmem:[%s521 + $0x78] sm:$0xff]
        %v576 = vld [vmem:[%s4] sm:$0xff]
        %vm577 = vcmask 64512
        %v579 = vsel %vm577, %v560, 0
        %v582 = vsel %vm577, %v561, 0
        %v585 = vsel %vm577, %v562, 0
        %v588 = vsel %vm577, %v563, 0
        %v591 = vsel %vm577, %v564, 0
        %v594 = vsel %vm577, %v565, 0
        %v597 = vsel %vm577, %v566, 0
        %v600 = vsel %vm577, %v567, 0
        %v603 = vsel %vm577, %v568, 0
        %v606 = vsel %vm577, %v569, 0
        %v609 = vsel %vm577, %v570, 0
        %v612 = vsel %vm577, %v571, 0
        %v615 = vsel %vm577, %v572, 0
        %v618 = vsel %vm577, %v573, 0
        %v621 = vsel %vm577, %v574, 0
        %v624 = vsel %vm577, %v575, 0
        %626 = vmatpush.msra.mxu0 0.0
        %627 = vmatpush.msra.mxu0 0.0
        %628 = vmatpush.msra.mxu0 0.0
        %629 = vmatpush.msra.mxu0 0.0
        %630 = vmatpush.msra.mxu0 0.0
        %631 = vmatpush.msra.mxu0 0.0
        %632 = vmatpush.msra.mxu0 0.0
        %633 = vmatpush.msra.mxu0 0.0
        %634 = vmatpush.msra.mxu0 0.0
        %635 = vmatpush.msra.mxu0 0.0
        %636 = vmatpush.msra.mxu0 0.0
        %637 = vmatpush.msra.mxu0 0.0
        %638 = vmatpush.msra.mxu0 0.0
        %639 = vmatpush.msra.mxu0 0.0
        %640 = vmatpush.msra.mxu0 0.0
        %641 = vmatpush.msra.mxu0 %v576
        %642 = vmatmul.f32.gmra.mxu0 %v579
        %v643 = vpop.f32.mrf.mxu0
        %v644 = vadd.f32 0.0, %v643
        %645 = vmatmul.f32.gmra.mxu0 %v582
        %v646 = vpop.f32.mrf.mxu0
        %v647 = vadd.f32 0.0, %v646
        %648 = vmatmul.f32.gmra.mxu0 %v585
        %v649 = vpop.f32.mrf.mxu0
        %v650 = vadd.f32 0.0, %v649
        %651 = vmatmul.f32.gmra.mxu0 %v588
        %v652 = vpop.f32.mrf.mxu0
        %v653 = vadd.f32 0.0, %v652
        %654 = vmatmul.f32.gmra.mxu0 %v591
        %v655 = vpop.f32.mrf.mxu0
        %v656 = vadd.f32 0.0, %v655
        %657 = vmatmul.f32.gmra.mxu0 %v594
        %v658 = vpop.f32.mrf.mxu0
        %v659 = vadd.f32 0.0, %v658
        %660 = vmatmul.f32.gmra.mxu0 %v597
        %v661 = vpop.f32.mrf.mxu0
        %v662 = vadd.f32 0.0, %v661
        %663 = vmatmul.f32.gmra.mxu0 %v600
        %v664 = vpop.f32.mrf.mxu0
        %v665 = vadd.f32 0.0, %v664
        %666 = vmatmul.f32.gmra.mxu0 %v603
        %v667 = vpop.f32.mrf.mxu0
        %v668 = vadd.f32 0.0, %v667
        %669 = vmatmul.f32.gmra.mxu0 %v606
        %v670 = vpop.f32.mrf.mxu0
        %v671 = vadd.f32 0.0, %v670
        %672 = vmatmul.f32.gmra.mxu0 %v609
        %v673 = vpop.f32.mrf.mxu0
        %v674 = vadd.f32 0.0, %v673
        %675 = vmatmul.f32.gmra.mxu0 %v612
        %v676 = vpop.f32.mrf.mxu0
        %v677 = vadd.f32 0.0, %v676
        %678 = vmatmul.f32.gmra.mxu0 %v615
        %v679 = vpop.f32.mrf.mxu0
        %v680 = vadd.f32 0.0, %v679
        %681 = vmatmul.f32.gmra.mxu0 %v618
        %v682 = vpop.f32.mrf.mxu0
        %v683 = vadd.f32 0.0, %v682
        %684 = vmatmul.f32.gmra.mxu0 %v621
        %v685 = vpop.f32.mrf.mxu0
        %v686 = vadd.f32 0.0, %v685
        %687 = vmatmul.f32.gmra.mxu0 %v624
        %v688 = vpop.f32.mrf.mxu0
        %v689 = vadd.f32 0.0, %v688
        %690 = vdwg.mxu0
        %691 = vmatpush.msra.mxu0 %v689
        %692 = vmatpush.msra.mxu0 %v686
        %693 = vmatpush.msra.mxu0 %v683
        %694 = vmatpush.msra.mxu0 %v680
        %695 = vmatpush.msra.mxu0 %v677
        %696 = vmatpush.msra.mxu0 %v674
        %697 = vmatpush.msra.mxu0 %v671
        %698 = vmatpush.msra.mxu0 %v668
        %699 = vmatpush.msra.mxu0 %v665
        %700 = vmatpush.msra.mxu0 %v662
        %701 = vmatpush.msra.mxu0 %v659
        %702 = vmatpush.msra.mxu0 %v656
        %703 = vmatpush.msra.mxu0 %v653
        %704 = vmatpush.msra.mxu0 %v650
        %705 = vmatpush.msra.mxu0 %v647
        %706 = vmatpush.msra.mxu0 %v644
        %707 = vmatmul.f32.gmra.mxu0 %v528
        %v708 = vpop.f32.mrf.mxu0
        %v709 = vadd.f32 0.0, %v708
        %710 = vmatmul.f32.gmra.mxu0 %v529
        %v711 = vpop.f32.mrf.mxu0
        %v712 = vadd.f32 0.0, %v711
        %713 = vmatmul.f32.gmra.mxu0 %v530
        %v714 = vpop.f32.mrf.mxu0
        %v715 = vadd.f32 0.0, %v714
        %716 = vmatmul.f32.gmra.mxu0 %v531
        %v717 = vpop.f32.mrf.mxu0
        %v718 = vadd.f32 0.0, %v717
        %719 = vmatmul.f32.gmra.mxu0 %v532
        %v720 = vpop.f32.mrf.mxu0
        %v721 = vadd.f32 0.0, %v720
        %722 = vmatmul.f32.gmra.mxu0 %v533
        %v723 = vpop.f32.mrf.mxu0
        %v724 = vadd.f32 0.0, %v723
        %725 = vmatmul.f32.gmra.mxu0 %v534
        %v726 = vpop.f32.mrf.mxu0
        %v727 = vadd.f32 0.0, %v726
        %728 = vmatmul.f32.gmra.mxu0 %v535
        %v729 = vpop.f32.mrf.mxu0
        %v730 = vadd.f32 0.0, %v729
        %731 = vmatmul.f32.gmra.mxu0 %v536
        %v732 = vpop.f32.mrf.mxu0
        %v733 = vadd.f32 0.0, %v732
        %734 = vmatmul.f32.gmra.mxu0 %v537
        %v735 = vpop.f32.mrf.mxu0
        %v736 = vadd.f32 0.0, %v735
        %737 = vmatmul.f32.gmra.mxu0 %v538
        %v738 = vpop.f32.mrf.mxu0
        %v739 = vadd.f32 0.0, %v738
        %740 = vmatmul.f32.gmra.mxu0 %v539
        %v741 = vpop.f32.mrf.mxu0
        %v742 = vadd.f32 0.0, %v741
        %743 = vmatmul.f32.gmra.mxu0 %v540
        %v744 = vpop.f32.mrf.mxu0
        %v745 = vadd.f32 0.0, %v744
        %746 = vmatmul.f32.gmra.mxu0 %v541
        %v747 = vpop.f32.mrf.mxu0
        %v748 = vadd.f32 0.0, %v747
        %749 = vmatmul.f32.gmra.mxu0 %v542
        %v750 = vpop.f32.mrf.mxu0
        %v751 = vadd.f32 0.0, %v750
        %752 = vmatmul.f32.gmra.mxu0 %v543
        %v753 = vpop.f32.mrf.mxu0
        %v754 = vadd.f32 0.0, %v753
        %755 = vdwg.mxu0
        %v756 = vadd.f32 %v644, %v709
        %v757 = vadd.f32 %v647, %v712
        %v758 = vadd.f32 %v650, %v715
        %v759 = vadd.f32 %v653, %v718
        %v760 = vadd.f32 %v656, %v721
        %v761 = vadd.f32 %v659, %v724
        %v762 = vadd.f32 %v662, %v727
        %v763 = vadd.f32 %v665, %v730
        %v764 = vadd.f32 %v668, %v733
        %v765 = vadd.f32 %v671, %v736
        %v766 = vadd.f32 %v674, %v739
        %v767 = vadd.f32 %v677, %v742
        %v768 = vadd.f32 %v680, %v745
        %v769 = vadd.f32 %v683, %v748
        %v770 = vadd.f32 %v686, %v751
        %v771 = vadd.f32 %v689, %v754
        %v772 = vld [vmem:[%s5] sm:$0xff]
        %v773 = vld [vmem:[%s5 + $0x8] sm:$0xff]
        %v774 = vld [vmem:[%s5 + $0x10] sm:$0xff]
        %v775 = vld [vmem:[%s5 + $0x18] sm:$0xff]
        %v776 = vld [vmem:[%s6] sm:$0x1]
        %v778 = vperm.slane %v776, 0
        %vm780 = vcmask 261120
        %v782 = vsel %vm780, %v756, 0
        %v785 = vsel %vm780, %v757, 0
        %v788 = vsel %vm780, %v758, 0
        %v791 = vsel %vm780, %v759, 0
        %v794 = vsel %vm780, %v760, 0
        %v797 = vsel %vm780, %v761, 0
        %v800 = vsel %vm780, %v762, 0
        %v803 = vsel %vm780, %v763, 0
        %v806 = vsel %vm780, %v764, 0
        %v809 = vsel %vm780, %v765, 0
        %v812 = vsel %vm780, %v766, 0
        %v815 = vsel %vm780, %v767, 0
        %v818 = vsel %vm780, %v768, 0
        %v821 = vsel %vm780, %v769, 0
        %v824 = vsel %vm780, %v770, 0
        %v827 = vsel %vm780, %v771, 0
        %829 = vmatpush.msra.mxu0 0.0
        %830 = vmatpush.msra.mxu0 0.0
        %831 = vmatpush.msra.mxu0 0.0
        %832 = vmatpush.msra.mxu0 0.0
        %833 = vmatpush.msra.mxu0 0.0
        %834 = vmatpush.msra.mxu0 0.0
        %835 = vmatpush.msra.mxu0 0.0
        %836 = vmatpush.msra.mxu0 0.0
        %837 = vmatpush.msra.mxu0 0.0
        %838 = vmatpush.msra.mxu0 0.0
        %839 = vmatpush.msra.mxu0 0.0
        %840 = vmatpush.msra.mxu0 0.0
        %841 = vmatpush.msra.mxu0 %v775
        %842 = vmatpush.msra.mxu0 %v774
        %843 = vmatpush.msra.mxu0 %v773
        %844 = vmatpush.msra.mxu0 %v772
        %845 = vmatmul.f32.gmra.mxu0 %v782
        %v846 = vpop.f32.mrf.mxu0
        %v847 = vadd.f32 %v778, %v846
        %848 = vmatmul.f32.gmra.mxu0 %v785
        %v849 = vpop.f32.mrf.mxu0
        %v850 = vadd.f32 %v778, %v849
        %851 = vmatmul.f32.gmra.mxu0 %v788
        %v852 = vpop.f32.mrf.mxu0
        %v853 = vadd.f32 %v778, %v852
        %854 = vmatmul.f32.gmra.mxu0 %v791
        %v855 = vpop.f32.mrf.mxu0
        %v856 = vadd.f32 %v778, %v855
        %857 = vmatmul.f32.gmra.mxu0 %v794
        %v858 = vpop.f32.mrf.mxu0
        %v859 = vadd.f32 %v778, %v858
        %860 = vmatmul.f32.gmra.mxu0 %v797
        %v861 = vpop.f32.mrf.mxu0
        %v862 = vadd.f32 %v778, %v861
        %863 = vmatmul.f32.gmra.mxu0 %v800
        %v864 = vpop.f32.mrf.mxu0
        %v865 = vadd.f32 %v778, %v864
        %866 = vmatmul.f32.gmra.mxu0 %v803
        %v867 = vpop.f32.mrf.mxu0
        %v868 = vadd.f32 %v778, %v867
        %869 = vmatmul.f32.gmra.mxu0 %v806
        %v870 = vpop.f32.mrf.mxu0
        %v871 = vadd.f32 %v778, %v870
        %872 = vmatmul.f32.gmra.mxu0 %v809
        %v873 = vpop.f32.mrf.mxu0
        %v874 = vadd.f32 %v778, %v873
        %875 = vmatmul.f32.gmra.mxu0 %v812
        %v876 = vpop.f32.mrf.mxu0
        %v877 = vadd.f32 %v778, %v876
        %878 = vmatmul.f32.gmra.mxu0 %v815
        %v879 = vpop.f32.mrf.mxu0
        %v880 = vadd.f32 %v778, %v879
        %881 = vmatmul.f32.gmra.mxu0 %v818
        %v882 = vpop.f32.mrf.mxu0
        %v883 = vadd.f32 %v778, %v882
        %884 = vmatmul.f32.gmra.mxu0 %v821
        %v885 = vpop.f32.mrf.mxu0
        %v886 = vadd.f32 %v778, %v885
        %887 = vmatmul.f32.gmra.mxu0 %v824
        %v888 = vpop.f32.mrf.mxu0
        %v889 = vadd.f32 %v778, %v888
        %890 = vmatmul.f32.gmra.mxu0 %v827
        %v891 = vpop.f32.mrf.mxu0
        %v892 = vadd.f32 %v778, %v891
        %893 = vdwg.mxu0
        %v894 = vmax.f32 %v847, 0.0
        %v895 = vmax.f32 %v850, 0.0
        %v896 = vmax.f32 %v853, 0.0
        %v897 = vmax.f32 %v856, 0.0
        %v898 = vmax.f32 %v859, 0.0
        %v899 = vmax.f32 %v862, 0.0
        %v900 = vmax.f32 %v865, 0.0
        %v901 = vmax.f32 %v868, 0.0
        %v902 = vmax.f32 %v871, 0.0
        %v903 = vmax.f32 %v874, 0.0
        %v904 = vmax.f32 %v877, 0.0
        %v905 = vmax.f32 %v880, 0.0
        %v906 = vmax.f32 %v883, 0.0
        %v907 = vmax.f32 %v886, 0.0
        %v908 = vmax.f32 %v889, 0.0
        %v909 = vmax.f32 %v892, 0.0
        %v910 = vld [vmem:[%s7] sm:$0xff]
        %v911 = vld [vmem:[%s7 + $0x8] sm:$0xff]
        %v912 = vld [vmem:[%s7 + $0x10] sm:$0xff]
        %v913 = vld [vmem:[%s7 + $0x18] sm:$0xff]
        %v914 = vld [vmem:[%s8] sm:$0x1]
        %v916 = vperm.slane %v914, 0
        %v919 = vsel %vm780, %v894, 0
        %v922 = vsel %vm780, %v895, 0
        %v925 = vsel %vm780, %v896, 0
        %v928 = vsel %vm780, %v897, 0
        %v931 = vsel %vm780, %v898, 0
        %v934 = vsel %vm780, %v899, 0
        %v937 = vsel %vm780, %v900, 0
        %v940 = vsel %vm780, %v901, 0
        %v943 = vsel %vm780, %v902, 0
        %v946 = vsel %vm780, %v903, 0
        %v949 = vsel %vm780, %v904, 0
        %v952 = vsel %vm780, %v905, 0
        %v955 = vsel %vm780, %v906, 0
        %v958 = vsel %vm780, %v907, 0
        %v961 = vsel %vm780, %v908, 0
        %v964 = vsel %vm780, %v909, 0
        %966 = vmatpush.msra.mxu0 0.0
        %967 = vmatpush.msra.mxu0 0.0
        %968 = vmatpush.msra.mxu0 0.0
        %969 = vmatpush.msra.mxu0 0.0
        %970 = vmatpush.msra.mxu0 0.0
        %971 = vmatpush.msra.mxu0 0.0
        %972 = vmatpush.msra.mxu0 0.0
        %973 = vmatpush.msra.mxu0 0.0
        %974 = vmatpush.msra.mxu0 0.0
        %975 = vmatpush.msra.mxu0 0.0
        %976 = vmatpush.msra.mxu0 0.0
        %977 = vmatpush.msra.mxu0 0.0
        %978 = vmatpush.msra.mxu0 %v913
        %979 = vmatpush.msra.mxu0 %v912
        %980 = vmatpush.msra.mxu0 %v911
        %981 = vmatpush.msra.mxu0 %v910
        %982 = vmatmul.f32.gmra.mxu0 %v919
        %v983 = vpop.f32.mrf.mxu0
        %v984 = vadd.f32 %v916, %v983
        %985 = vmatmul.f32.gmra.mxu0 %v922
        %v986 = vpop.f32.mrf.mxu0
        %v987 = vadd.f32 %v916, %v986
        %988 = vmatmul.f32.gmra.mxu0 %v925
        %v989 = vpop.f32.mrf.mxu0
        %v990 = vadd.f32 %v916, %v989
        %991 = vmatmul.f32.gmra.mxu0 %v928
        %v992 = vpop.f32.mrf.mxu0
        %v993 = vadd.f32 %v916, %v992
        %994 = vmatmul.f32.gmra.mxu0 %v931
        %v995 = vpop.f32.mrf.mxu0
        %v996 = vadd.f32 %v916, %v995
        %997 = vmatmul.f32.gmra.mxu0 %v934
        %v998 = vpop.f32.mrf.mxu0
        %v999 = vadd.f32 %v916, %v998
        %1000 = vmatmul.f32.gmra.mxu0 %v937
        %v1001 = vpop.f32.mrf.mxu0
        %v1002 = vadd.f32 %v916, %v1001
        %1003 = vmatmul.f32.gmra.mxu0 %v940
        %v1004 = vpop.f32.mrf.mxu0
        %v1005 = vadd.f32 %v916, %v1004
        %1006 = vmatmul.f32.gmra.mxu0 %v943
        %v1007 = vpop.f32.mrf.mxu0
        %v1008 = vadd.f32 %v916, %v1007
        %1009 = vmatmul.f32.gmra.mxu0 %v946
        %v1010 = vpop.f32.mrf.mxu0
        %v1011 = vadd.f32 %v916, %v1010
        %1012 = vmatmul.f32.gmra.mxu0 %v949
        %v1013 = vpop.f32.mrf.mxu0
        %v1014 = vadd.f32 %v916, %v1013
        %1015 = vmatmul.f32.gmra.mxu0 %v952
        %v1016 = vpop.f32.mrf.mxu0
        %v1017 = vadd.f32 %v916, %v1016
        %1018 = vmatmul.f32.gmra.mxu0 %v955
        %v1019 = vpop.f32.mrf.mxu0
        %v1020 = vadd.f32 %v916, %v1019
        %1021 = vmatmul.f32.gmra.mxu0 %v958
        %v1022 = vpop.f32.mrf.mxu0
        %v1023 = vadd.f32 %v916, %v1022
        %1024 = vmatmul.f32.gmra.mxu0 %v961
        %v1025 = vpop.f32.mrf.mxu0
        %v1026 = vadd.f32 %v916, %v1025
        %1027 = vmatmul.f32.gmra.mxu0 %v964
        %v1028 = vpop.f32.mrf.mxu0
        %v1029 = vadd.f32 %v916, %v1028
        %1030 = vdwg.mxu0
        %v1031 = vmax.f32 %v984, 0.0
        %v1032 = vmax.f32 %v987, 0.0
        %v1033 = vmax.f32 %v990, 0.0
        %v1034 = vmax.f32 %v993, 0.0
        %v1035 = vmax.f32 %v996, 0.0
        %v1036 = vmax.f32 %v999, 0.0
        %v1037 = vmax.f32 %v1002, 0.0
        %v1038 = vmax.f32 %v1005, 0.0
        %v1039 = vmax.f32 %v1008, 0.0
        %v1040 = vmax.f32 %v1011, 0.0
        %v1041 = vmax.f32 %v1014, 0.0
        %v1042 = vmax.f32 %v1017, 0.0
        %v1043 = vmax.f32 %v1020, 0.0
        %v1044 = vmax.f32 %v1023, 0.0
        %v1045 = vmax.f32 %v1026, 0.0
        %v1046 = vmax.f32 %v1029, 0.0
        %1048 = vset.pattern.permute.xlu0 0
        %1049 = vperm.xlu0 %1048, %v544
        %v1050 = vpop.permute.xlu0 %1049
        %1053 = vset.pattern.permute.xlu0 0
        %1054 = vperm.xlu0 %1053, %v545
        %v1055 = vpop.permute.xlu0 %1054
        %1058 = vset.pattern.permute.xlu0 0
        %1059 = vperm.xlu0 %1058, %v546
        %v1060 = vpop.permute.xlu0 %1059
        %1063 = vset.pattern.permute.xlu0 0
        %1064 = vperm.xlu0 %1063, %v547
        %v1065 = vpop.permute.xlu0 %1064
        %1068 = vset.pattern.permute.xlu0 0
        %1069 = vperm.xlu0 %1068, %v548
        %v1070 = vpop.permute.xlu0 %1069
        %1073 = vset.pattern.permute.xlu0 0
        %1074 = vperm.xlu0 %1073, %v549
        %v1075 = vpop.permute.xlu0 %1074
        %1078 = vset.pattern.permute.xlu0 0
        %1079 = vperm.xlu0 %1078, %v550
        %v1080 = vpop.permute.xlu0 %1079
        %1083 = vset.pattern.permute.xlu0 0
        %1084 = vperm.xlu0 %1083, %v551
        %v1085 = vpop.permute.xlu0 %1084
        %1088 = vset.pattern.permute.xlu0 0
        %1089 = vperm.xlu0 %1088, %v552
        %v1090 = vpop.permute.xlu0 %1089
        %1093 = vset.pattern.permute.xlu0 0
        %1094 = vperm.xlu0 %1093, %v553
        %v1095 = vpop.permute.xlu0 %1094
        %1098 = vset.pattern.permute.xlu0 0
        %1099 = vperm.xlu0 %1098, %v554
        %v1100 = vpop.permute.xlu0 %1099
        %1103 = vset.pattern.permute.xlu0 0
        %1104 = vperm.xlu0 %1103, %v555
        %v1105 = vpop.permute.xlu0 %1104
        %1108 = vset.pattern.permute.xlu0 0
        %1109 = vperm.xlu0 %1108, %v556
        %v1110 = vpop.permute.xlu0 %1109
        %1113 = vset.pattern.permute.xlu0 0
        %1114 = vperm.xlu0 %1113, %v557
        %v1115 = vpop.permute.xlu0 %1114
        %1118 = vset.pattern.permute.xlu0 0
        %1119 = vperm.xlu0 %1118, %v558
        %v1120 = vpop.permute.xlu0 %1119
        %1123 = vset.pattern.permute.xlu0 0
        %1124 = vperm.xlu0 %1123, %v559
        %v1125 = vpop.permute.xlu0 %1124
        %v1127 = vmul.f32 %v1031, %v1050
        %v1128 = vmul.f32 %v1032, %v1055
        %v1129 = vmul.f32 %v1033, %v1060
        %v1130 = vmul.f32 %v1034, %v1065
        %v1131 = vmul.f32 %v1035, %v1070
        %v1132 = vmul.f32 %v1036, %v1075
        %v1133 = vmul.f32 %v1037, %v1080
        %v1134 = vmul.f32 %v1038, %v1085
        %v1135 = vmul.f32 %v1039, %v1090
        %v1136 = vmul.f32 %v1040, %v1095
        %v1137 = vmul.f32 %v1041, %v1100
        %v1138 = vmul.f32 %v1042, %v1105
        %v1139 = vmul.f32 %v1043, %v1110
        %v1140 = vmul.f32 %v1044, %v1115
        %v1141 = vmul.f32 %v1045, %v1120
        %v1142 = vmul.f32 %v1046, %v1125
        %v1143 = vadd.f32 %v1127, %v644
        %v1144 = vadd.f32 %v1128, %v647
        %v1145 = vadd.f32 %v1129, %v650
        %v1146 = vadd.f32 %v1130, %v653
        %v1147 = vadd.f32 %v1131, %v656
        %v1148 = vadd.f32 %v1132, %v659
        %v1149 = vadd.f32 %v1133, %v662
        %v1150 = vadd.f32 %v1134, %v665
        %v1151 = vadd.f32 %v1135, %v668
        %v1152 = vadd.f32 %v1136, %v671
        %v1153 = vadd.f32 %v1137, %v674
        %v1154 = vadd.f32 %v1138, %v677
        %v1155 = vadd.f32 %v1139, %v680
        %v1156 = vadd.f32 %v1140, %v683
        %v1157 = vadd.f32 %v1141, %v686
        %v1158 = vadd.f32 %v1142, %v689
        %1159 = vmatpush.msra.mxu0 %v1158
        %1160 = vmatpush.msra.mxu0 %v1157
        %1161 = vmatpush.msra.mxu0 %v1156
        %1162 = vmatpush.msra.mxu0 %v1155
        %1163 = vmatpush.msra.mxu0 %v1154
        %1164 = vmatpush.msra.mxu0 %v1153
        %1165 = vmatpush.msra.mxu0 %v1152
        %1166 = vmatpush.msra.mxu0 %v1151
        %1167 = vmatpush.msra.mxu0 %v1150
        %1168 = vmatpush.msra.mxu0 %v1149
        %1169 = vmatpush.msra.mxu0 %v1148
        %1170 = vmatpush.msra.mxu0 %v1147
        %1171 = vmatpush.msra.mxu0 %v1146
        %1172 = vmatpush.msra.mxu0 %v1145
        %1173 = vmatpush.msra.mxu0 %v1144
        %1174 = vmatpush.msra.mxu0 %v1143
        %1175 = vmatmul.f32.gmra.mxu0 %v528
        %v1176 = vpop.f32.mrf.mxu0
        %v1177 = vadd.f32 0.0, %v1176
        %1178 = vmatmul.f32.gmra.mxu0 %v529
        %v1179 = vpop.f32.mrf.mxu0
        %v1180 = vadd.f32 0.0, %v1179
        %1181 = vmatmul.f32.gmra.mxu0 %v530
        %v1182 = vpop.f32.mrf.mxu0
        %v1183 = vadd.f32 0.0, %v1182
        %1184 = vmatmul.f32.gmra.mxu0 %v531
        %v1185 = vpop.f32.mrf.mxu0
        %v1186 = vadd.f32 0.0, %v1185
        %1187 = vmatmul.f32.gmra.mxu0 %v532
        %v1188 = vpop.f32.mrf.mxu0
        %v1189 = vadd.f32 0.0, %v1188
        %1190 = vmatmul.f32.gmra.mxu0 %v533
        %v1191 = vpop.f32.mrf.mxu0
        %v1192 = vadd.f32 0.0, %v1191
        %1193 = vmatmul.f32.gmra.mxu0 %v534
        %v1194 = vpop.f32.mrf.mxu0
        %v1195 = vadd.f32 0.0, %v1194
        %1196 = vmatmul.f32.gmra.mxu0 %v535
        %v1197 = vpop.f32.mrf.mxu0
        %v1198 = vadd.f32 0.0, %v1197
        %1199 = vmatmul.f32.gmra.mxu0 %v536
        %v1200 = vpop.f32.mrf.mxu0
        %v1201 = vadd.f32 0.0, %v1200
        %1202 = vmatmul.f32.gmra.mxu0 %v537
        %v1203 = vpop.f32.mrf.mxu0
        %v1204 = vadd.f32 0.0, %v1203
        %1205 = vmatmul.f32.gmra.mxu0 %v538
        %v1206 = vpop.f32.mrf.mxu0
        %v1207 = vadd.f32 0.0, %v1206
        %1208 = vmatmul.f32.gmra.mxu0 %v539
        %v1209 = vpop.f32.mrf.mxu0
        %v1210 = vadd.f32 0.0, %v1209
        %1211 = vmatmul.f32.gmra.mxu0 %v540
        %v1212 = vpop.f32.mrf.mxu0
        %v1213 = vadd.f32 0.0, %v1212
        %1214 = vmatmul.f32.gmra.mxu0 %v541
        %v1215 = vpop.f32.mrf.mxu0
        %v1216 = vadd.f32 0.0, %v1215
        %1217 = vmatmul.f32.gmra.mxu0 %v542
        %v1218 = vpop.f32.mrf.mxu0
        %v1219 = vadd.f32 0.0, %v1218
        %1220 = vmatmul.f32.gmra.mxu0 %v543
        %v1221 = vpop.f32.mrf.mxu0
        %v1222 = vadd.f32 0.0, %v1221
        %1223 = vdwg.mxu0
        %v1224 = vadd.f32 %v1143, %v1177
        %v1225 = vadd.f32 %v1144, %v1180
        %v1226 = vadd.f32 %v1145, %v1183
        %v1227 = vadd.f32 %v1146, %v1186
        %v1228 = vadd.f32 %v1147, %v1189
        %v1229 = vadd.f32 %v1148, %v1192
        %v1230 = vadd.f32 %v1149, %v1195
        %v1231 = vadd.f32 %v1150, %v1198
        %v1232 = vadd.f32 %v1151, %v1201
        %v1233 = vadd.f32 %v1152, %v1204
        %v1234 = vadd.f32 %v1153, %v1207
        %v1235 = vadd.f32 %v1154, %v1210
        %v1236 = vadd.f32 %v1155, %v1213
        %v1237 = vadd.f32 %v1156, %v1216
        %v1238 = vadd.f32 %v1157, %v1219
        %v1239 = vadd.f32 %v1158, %v1222
        %s1240 = scalar_lea.vmem %s5, 32
        %v1241 = vld [vmem:[%s1240] sm:$0xff]
        %v1242 = vld [vmem:[%s1240 + $0x8] sm:$0xff]
        %v1243 = vld [vmem:[%s1240 + $0x10] sm:$0xff]
        %v1244 = vld [vmem:[%s1240 + $0x18] sm:$0xff]
        %s1245 = scalar_lea.vmem %s6, 1
        %v1246 = vld [vmem:[%s1245] sm:$0x1]
        %v1248 = vperm.slane %v1246, 0
        %v1251 = vsel %vm780, %v1224, 0
        %v1254 = vsel %vm780, %v1225, 0
        %v1257 = vsel %vm780, %v1226, 0
        %v1260 = vsel %vm780, %v1227, 0
        %v1263 = vsel %vm780, %v1228, 0
        %v1266 = vsel %vm780, %v1229, 0
        %v1269 = vsel %vm780, %v1230, 0
        %v1272 = vsel %vm780, %v1231, 0
        %v1275 = vsel %vm780, %v1232, 0
        %v1278 = vsel %vm780, %v1233, 0
        %v1281 = vsel %vm780, %v1234, 0
        %v1284 = vsel %vm780, %v1235, 0
        %v1287 = vsel %vm780, %v1236, 0
        %v1290 = vsel %vm780, %v1237, 0
        %v1293 = vsel %vm780, %v1238, 0
        %v1296 = vsel %vm780, %v1239, 0
        %1298 = vmatpush.msra.mxu0 0.0
        %1299 = vmatpush.msra.mxu0 0.0
        %1300 = vmatpush.msra.mxu0 0.0
        %1301 = vmatpush.msra.mxu0 0.0
        %1302 = vmatpush.msra.mxu0 0.0
        %1303 = vmatpush.msra.mxu0 0.0
        %1304 = vmatpush.msra.mxu0 0.0
        %1305 = vmatpush.msra.mxu0 0.0
        %1306 = vmatpush.msra.mxu0 0.0
        %1307 = vmatpush.msra.mxu0 0.0
        %1308 = vmatpush.msra.mxu0 0.0
        %1309 = vmatpush.msra.mxu0 0.0
        %1310 = vmatpush.msra.mxu0 %v1244
        %1311 = vmatpush.msra.mxu0 %v1243
        %1312 = vmatpush.msra.mxu0 %v1242
        %1313 = vmatpush.msra.mxu0 %v1241
        %1314 = vmatmul.f32.gmra.mxu0 %v1251
        %v1315 = vpop.f32.mrf.mxu0
        %v1316 = vadd.f32 %v1248, %v1315
        %1317 = vmatmul.f32.gmra.mxu0 %v1254
        %v1318 = vpop.f32.mrf.mxu0
        %v1319 = vadd.f32 %v1248, %v1318
        %1320 = vmatmul.f32.gmra.mxu0 %v1257
        %v1321 = vpop.f32.mrf.mxu0
        %v1322 = vadd.f32 %v1248, %v1321
        %1323 = vmatmul.f32.gmra.mxu0 %v1260
        %v1324 = vpop.f32.mrf.mxu0
        %v1325 = vadd.f32 %v1248, %v1324
        %1326 = vmatmul.f32.gmra.mxu0 %v1263
        %v1327 = vpop.f32.mrf.mxu0
        %v1328 = vadd.f32 %v1248, %v1327
        %1329 = vmatmul.f32.gmra.mxu0 %v1266
        %v1330 = vpop.f32.mrf.mxu0
        %v1331 = vadd.f32 %v1248, %v1330
        %1332 = vmatmul.f32.gmra.mxu0 %v1269
        %v1333 = vpop.f32.mrf.mxu0
        %v1334 = vadd.f32 %v1248, %v1333
        %1335 = vmatmul.f32.gmra.mxu0 %v1272
        %v1336 = vpop.f32.mrf.mxu0
        %v1337 = vadd.f32 %v1248, %v1336
        %1338 = vmatmul.f32.gmra.mxu0 %v1275
        %v1339 = vpop.f32.mrf.mxu0
        %v1340 = vadd.f32 %v1248, %v1339
        %1341 = vmatmul.f32.gmra.mxu0 %v1278
        %v1342 = vpop.f32.mrf.mxu0
        %v1343 = vadd.f32 %v1248, %v1342
        %1344 = vmatmul.f32.gmra.mxu0 %v1281
        %v1345 = vpop.f32.mrf.mxu0
        %v1346 = vadd.f32 %v1248, %v1345
        %1347 = vmatmul.f32.gmra.mxu0 %v1284
        %v1348 = vpop.f32.mrf.mxu0
        %v1349 = vadd.f32 %v1248, %v1348
        %1350 = vmatmul.f32.gmra.mxu0 %v1287
        %v1351 = vpop.f32.mrf.mxu0
        %v1352 = vadd.f32 %v1248, %v1351
        %1353 = vmatmul.f32.gmra.mxu0 %v1290
        %v1354 = vpop.f32.mrf.mxu0
        %v1355 = vadd.f32 %v1248, %v1354
        %1356 = vmatmul.f32.gmra.mxu0 %v1293
        %v1357 = vpop.f32.mrf.mxu0
        %v1358 = vadd.f32 %v1248, %v1357
        %1359 = vmatmul.f32.gmra.mxu0 %v1296
        %v1360 = vpop.f32.mrf.mxu0
        %v1361 = vadd.f32 %v1248, %v1360
        %1362 = vdwg.mxu0
        %v1363 = vmax.f32 %v1316, 0.0
        %v1364 = vmax.f32 %v1319, 0.0
        %v1365 = vmax.f32 %v1322, 0.0
        %v1366 = vmax.f32 %v1325, 0.0
        %v1367 = vmax.f32 %v1328, 0.0
        %v1368 = vmax.f32 %v1331, 0.0
        %v1369 = vmax.f32 %v1334, 0.0
        %v1370 = vmax.f32 %v1337, 0.0
        %v1371 = vmax.f32 %v1340, 0.0
        %v1372 = vmax.f32 %v1343, 0.0
        %v1373 = vmax.f32 %v1346, 0.0
        %v1374 = vmax.f32 %v1349, 0.0
        %v1375 = vmax.f32 %v1352, 0.0
        %v1376 = vmax.f32 %v1355, 0.0
        %v1377 = vmax.f32 %v1358, 0.0
        %v1378 = vmax.f32 %v1361, 0.0
        %s1379 = scalar_lea.vmem %s7, 32
        %v1380 = vld [vmem:[%s1379] sm:$0xff]
        %v1381 = vld [vmem:[%s1379 + $0x8] sm:$0xff]
        %v1382 = vld [vmem:[%s1379 + $0x10] sm:$0xff]
        %v1383 = vld [vmem:[%s1379 + $0x18] sm:$0xff]
        %s1384 = scalar_lea.vmem %s8, 1
        %v1385 = vld [vmem:[%s1384] sm:$0x1]
        %v1387 = vperm.slane %v1385, 0
        %v1390 = vsel %vm780, %v1363, 0
        %v1393 = vsel %vm780, %v1364, 0
        %v1396 = vsel %vm780, %v1365, 0
        %v1399 = vsel %vm780, %v1366, 0
        %v1402 = vsel %vm780, %v1367, 0
        %v1405 = vsel %vm780, %v1368, 0
        %v1408 = vsel %vm780, %v1369, 0
        %v1411 = vsel %vm780, %v1370, 0
        %v1414 = vsel %vm780, %v1371, 0
        %v1417 = vsel %vm780, %v1372, 0
        %v1420 = vsel %vm780, %v1373, 0
        %v1423 = vsel %vm780, %v1374, 0
        %v1426 = vsel %vm780, %v1375, 0
        %v1429 = vsel %vm780, %v1376, 0
        %v1432 = vsel %vm780, %v1377, 0
        %v1435 = vsel %vm780, %v1378, 0
        %1437 = vmatpush.msra.mxu0 0.0
        %1438 = vmatpush.msra.mxu0 0.0
        %1439 = vmatpush.msra.mxu0 0.0
        %1440 = vmatpush.msra.mxu0 0.0
        %1441 = vmatpush.msra.mxu0 0.0
        %1442 = vmatpush.msra.mxu0 0.0
        %1443 = vmatpush.msra.mxu0 0.0
        %1444 = vmatpush.msra.mxu0 0.0
        %1445 = vmatpush.msra.mxu0 0.0
        %1446 = vmatpush.msra.mxu0 0.0
        %1447 = vmatpush.msra.mxu0 0.0
        %1448 = vmatpush.msra.mxu0 0.0
        %1449 = vmatpush.msra.mxu0 %v1383
        %1450 = vmatpush.msra.mxu0 %v1382
        %1451 = vmatpush.msra.mxu0 %v1381
        %1452 = vmatpush.msra.mxu0 %v1380
        %1453 = vmatmul.f32.gmra.mxu0 %v1390
        %v1454 = vpop.f32.mrf.mxu0
        %v1455 = vadd.f32 %v1387, %v1454
        %1456 = vmatmul.f32.gmra.mxu0 %v1393
        %v1457 = vpop.f32.mrf.mxu0
        %v1458 = vadd.f32 %v1387, %v1457
        %1459 = vmatmul.f32.gmra.mxu0 %v1396
        %v1460 = vpop.f32.mrf.mxu0
        %v1461 = vadd.f32 %v1387, %v1460
        %1462 = vmatmul.f32.gmra.mxu0 %v1399
        %v1463 = vpop.f32.mrf.mxu0
        %v1464 = vadd.f32 %v1387, %v1463
        %1465 = vmatmul.f32.gmra.mxu0 %v1402
        %v1466 = vpop.f32.mrf.mxu0
        %v1467 = vadd.f32 %v1387, %v1466
        %1468 = vmatmul.f32.gmra.mxu0 %v1405
        %v1469 = vpop.f32.mrf.mxu0
        %v1470 = vadd.f32 %v1387, %v1469
        %1471 = vmatmul.f32.gmra.mxu0 %v1408
        %v1472 = vpop.f32.mrf.mxu0
        %v1473 = vadd.f32 %v1387, %v1472
        %1474 = vmatmul.f32.gmra.mxu0 %v1411
        %v1475 = vpop.f32.mrf.mxu0
        %v1476 = vadd.f32 %v1387, %v1475
        %1477 = vmatmul.f32.gmra.mxu0 %v1414
        %v1478 = vpop.f32.mrf.mxu0
        %v1479 = vadd.f32 %v1387, %v1478
        %1480 = vmatmul.f32.gmra.mxu0 %v1417
        %v1481 = vpop.f32.mrf.mxu0
        %v1482 = vadd.f32 %v1387, %v1481
        %1483 = vmatmul.f32.gmra.mxu0 %v1420
        %v1484 = vpop.f32.mrf.mxu0
        %v1485 = vadd.f32 %v1387, %v1484
        %1486 = vmatmul.f32.gmra.mxu0 %v1423
        %v1487 = vpop.f32.mrf.mxu0
        %v1488 = vadd.f32 %v1387, %v1487
        %1489 = vmatmul.f32.gmra.mxu0 %v1426
        %v1490 = vpop.f32.mrf.mxu0
        %v1491 = vadd.f32 %v1387, %v1490
        %1492 = vmatmul.f32.gmra.mxu0 %v1429
        %v1493 = vpop.f32.mrf.mxu0
        %v1494 = vadd.f32 %v1387, %v1493
        %1495 = vmatmul.f32.gmra.mxu0 %v1432
        %v1496 = vpop.f32.mrf.mxu0
        %v1497 = vadd.f32 %v1387, %v1496
        %1498 = vmatmul.f32.gmra.mxu0 %v1435
        %v1499 = vpop.f32.mrf.mxu0
        %v1500 = vadd.f32 %v1387, %v1499
        %1501 = vdwg.mxu0
        %v1502 = vmax.f32 %v1455, 0.0
        %v1503 = vmax.f32 %v1458, 0.0
        %v1504 = vmax.f32 %v1461, 0.0
        %v1505 = vmax.f32 %v1464, 0.0
        %v1506 = vmax.f32 %v1467, 0.0
        %v1507 = vmax.f32 %v1470, 0.0
        %v1508 = vmax.f32 %v1473, 0.0
        %v1509 = vmax.f32 %v1476, 0.0
        %v1510 = vmax.f32 %v1479, 0.0
        %v1511 = vmax.f32 %v1482, 0.0
        %v1512 = vmax.f32 %v1485, 0.0
        %v1513 = vmax.f32 %v1488, 0.0
        %v1514 = vmax.f32 %v1491, 0.0
        %v1515 = vmax.f32 %v1494, 0.0
        %v1516 = vmax.f32 %v1497, 0.0
        %v1517 = vmax.f32 %v1500, 0.0
        %v1518 = vmul.f32 %v1502, %v1050
        %v1519 = vmul.f32 %v1503, %v1055
        %v1520 = vmul.f32 %v1504, %v1060
        %v1521 = vmul.f32 %v1505, %v1065
        %v1522 = vmul.f32 %v1506, %v1070
        %v1523 = vmul.f32 %v1507, %v1075
        %v1524 = vmul.f32 %v1508, %v1080
        %v1525 = vmul.f32 %v1509, %v1085
        %v1526 = vmul.f32 %v1510, %v1090
        %v1527 = vmul.f32 %v1511, %v1095
        %v1528 = vmul.f32 %v1512, %v1100
        %v1529 = vmul.f32 %v1513, %v1105
        %v1530 = vmul.f32 %v1514, %v1110
        %v1531 = vmul.f32 %v1515, %v1115
        %v1532 = vmul.f32 %v1516, %v1120
        %v1533 = vmul.f32 %v1517, %v1125
        %v1534 = vadd.f32 %v1518, %v644
        %v1535 = vadd.f32 %v1519, %v647
        %v1536 = vadd.f32 %v1520, %v650
        %v1537 = vadd.f32 %v1521, %v653
        %v1538 = vadd.f32 %v1522, %v656
        %v1539 = vadd.f32 %v1523, %v659
        %v1540 = vadd.f32 %v1524, %v662
        %v1541 = vadd.f32 %v1525, %v665
        %v1542 = vadd.f32 %v1526, %v668
        %v1543 = vadd.f32 %v1527, %v671
        %v1544 = vadd.f32 %v1528, %v674
        %v1545 = vadd.f32 %v1529, %v677
        %v1546 = vadd.f32 %v1530, %v680
        %v1547 = vadd.f32 %v1531, %v683
        %v1548 = vadd.f32 %v1532, %v686
        %v1549 = vadd.f32 %v1533, %v689
        %1550 = vmatpush.msra.mxu0 %v1549
        %1551 = vmatpush.msra.mxu0 %v1548
        %1552 = vmatpush.msra.mxu0 %v1547
        %1553 = vmatpush.msra.mxu0 %v1546
        %1554 = vmatpush.msra.mxu0 %v1545
        %1555 = vmatpush.msra.mxu0 %v1544
        %1556 = vmatpush.msra.mxu0 %v1543
        %1557 = vmatpush.msra.mxu0 %v1542
        %1558 = vmatpush.msra.mxu0 %v1541
        %1559 = vmatpush.msra.mxu0 %v1540
        %1560 = vmatpush.msra.mxu0 %v1539
        %1561 = vmatpush.msra.mxu0 %v1538
        %1562 = vmatpush.msra.mxu0 %v1537
        %1563 = vmatpush.msra.mxu0 %v1536
        %1564 = vmatpush.msra.mxu0 %v1535
        %1565 = vmatpush.msra.mxu0 %v1534
        %1566 = vmatmul.f32.gmra.mxu0 %v528
        %v1567 = vpop.f32.mrf.mxu0
        %v1568 = vadd.f32 0.0, %v1567
        %1569 = vmatmul.f32.gmra.mxu0 %v529
        %v1570 = vpop.f32.mrf.mxu0
        %v1571 = vadd.f32 0.0, %v1570
        %1572 = vmatmul.f32.gmra.mxu0 %v530
        %v1573 = vpop.f32.mrf.mxu0
        %v1574 = vadd.f32 0.0, %v1573
        %1575 = vmatmul.f32.gmra.mxu0 %v531
        %v1576 = vpop.f32.mrf.mxu0
        %v1577 = vadd.f32 0.0, %v1576
        %1578 = vmatmul.f32.gmra.mxu0 %v532
        %v1579 = vpop.f32.mrf.mxu0
        %v1580 = vadd.f32 0.0, %v1579
        %1581 = vmatmul.f32.gmra.mxu0 %v533
        %v1582 = vpop.f32.mrf.mxu0
        %v1583 = vadd.f32 0.0, %v1582
        %1584 = vmatmul.f32.gmra.mxu0 %v534
        %v1585 = vpop.f32.mrf.mxu0
        %v1586 = vadd.f32 0.0, %v1585
        %1587 = vmatmul.f32.gmra.mxu0 %v535
        %v1588 = vpop.f32.mrf.mxu0
        %v1589 = vadd.f32 0.0, %v1588
        %1590 = vmatmul.f32.gmra.mxu0 %v536
        %v1591 = vpop.f32.mrf.mxu0
        %v1592 = vadd.f32 0.0, %v1591
        %1593 = vmatmul.f32.gmra.mxu0 %v537
        %v1594 = vpop.f32.mrf.mxu0
        %v1595 = vadd.f32 0.0, %v1594
        %1596 = vmatmul.f32.gmra.mxu0 %v538
        %v1597 = vpop.f32.mrf.mxu0
        %v1598 = vadd.f32 0.0, %v1597
        %1599 = vmatmul.f32.gmra.mxu0 %v539
        %v1600 = vpop.f32.mrf.mxu0
        %v1601 = vadd.f32 0.0, %v1600
        %1602 = vmatmul.f32.gmra.mxu0 %v540
        %v1603 = vpop.f32.mrf.mxu0
        %v1604 = vadd.f32 0.0, %v1603
        %1605 = vmatmul.f32.gmra.mxu0 %v541
        %v1606 = vpop.f32.mrf.mxu0
        %v1607 = vadd.f32 0.0, %v1606
        %1608 = vmatmul.f32.gmra.mxu0 %v542
        %v1609 = vpop.f32.mrf.mxu0
        %v1610 = vadd.f32 0.0, %v1609
        %1611 = vmatmul.f32.gmra.mxu0 %v543
        %v1612 = vpop.f32.mrf.mxu0
        %v1613 = vadd.f32 0.0, %v1612
        %1614 = vdwg.mxu0
        %v1615 = vadd.f32 %v1534, %v1568
        %v1616 = vadd.f32 %v1535, %v1571
        %v1617 = vadd.f32 %v1536, %v1574
        %v1618 = vadd.f32 %v1537, %v1577
        %v1619 = vadd.f32 %v1538, %v1580
        %v1620 = vadd.f32 %v1539, %v1583
        %v1621 = vadd.f32 %v1540, %v1586
        %v1622 = vadd.f32 %v1541, %v1589
        %v1623 = vadd.f32 %v1542, %v1592
        %v1624 = vadd.f32 %v1543, %v1595
        %v1625 = vadd.f32 %v1544, %v1598
        %v1626 = vadd.f32 %v1545, %v1601
        %v1627 = vadd.f32 %v1546, %v1604
        %v1628 = vadd.f32 %v1547, %v1607
        %v1629 = vadd.f32 %v1548, %v1610
        %v1630 = vadd.f32 %v1549, %v1613
        %s1631 = scalar_lea.vmem %s5, 64
        %v1632 = vld [vmem:[%s1631] sm:$0xff]
        %v1633 = vld [vmem:[%s1631 + $0x8] sm:$0xff]
        %v1634 = vld [vmem:[%s1631 + $0x10] sm:$0xff]
        %v1635 = vld [vmem:[%s1631 + $0x18] sm:$0xff]
        %s1636 = scalar_lea.vmem %s6, 2
        %v1637 = vld [vmem:[%s1636] sm:$0x1]
        %v1639 = vperm.slane %v1637, 0
        %v1642 = vsel %vm780, %v1615, 0
        %v1645 = vsel %vm780, %v1616, 0
        %v1648 = vsel %vm780, %v1617, 0
        %v1651 = vsel %vm780, %v1618, 0
        %v1654 = vsel %vm780, %v1619, 0
        %v1657 = vsel %vm780, %v1620, 0
        %v1660 = vsel %vm780, %v1621, 0
        %v1663 = vsel %vm780, %v1622, 0
        %v1666 = vsel %vm780, %v1623, 0
        %v1669 = vsel %vm780, %v1624, 0
        %v1672 = vsel %vm780, %v1625, 0
        %v1675 = vsel %vm780, %v1626, 0
        %v1678 = vsel %vm780, %v1627, 0
        %v1681 = vsel %vm780, %v1628, 0
        %v1684 = vsel %vm780, %v1629, 0
        %v1687 = vsel %vm780, %v1630, 0
        %1689 = vmatpush.msra.mxu0 0.0
        %1690 = vmatpush.msra.mxu0 0.0
        %1691 = vmatpush.msra.mxu0 0.0
        %1692 = vmatpush.msra.mxu0 0.0
        %1693 = vmatpush.msra.mxu0 0.0
        %1694 = vmatpush.msra.mxu0 0.0
        %1695 = vmatpush.msra.mxu0 0.0
        %1696 = vmatpush.msra.mxu0 0.0
        %1697 = vmatpush.msra.mxu0 0.0
        %1698 = vmatpush.msra.mxu0 0.0
        %1699 = vmatpush.msra.mxu0 0.0
        %1700 = vmatpush.msra.mxu0 0.0
        %1701 = vmatpush.msra.mxu0 %v1635
        %1702 = vmatpush.msra.mxu0 %v1634
        %1703 = vmatpush.msra.mxu0 %v1633
        %1704 = vmatpush.msra.mxu0 %v1632
        %1705 = vmatmul.f32.gmra.mxu0 %v1642
        %v1706 = vpop.f32.mrf.mxu0
        %v1707 = vadd.f32 %v1639, %v1706
        %1708 = vmatmul.f32.gmra.mxu0 %v1645
        %v1709 = vpop.f32.mrf.mxu0
        %v1710 = vadd.f32 %v1639, %v1709
        %1711 = vmatmul.f32.gmra.mxu0 %v1648
        %v1712 = vpop.f32.mrf.mxu0
        %v1713 = vadd.f32 %v1639, %v1712
        %1714 = vmatmul.f32.gmra.mxu0 %v1651
        %v1715 = vpop.f32.mrf.mxu0
        %v1716 = vadd.f32 %v1639, %v1715
        %1717 = vmatmul.f32.gmra.mxu0 %v1654
        %v1718 = vpop.f32.mrf.mxu0
        %v1719 = vadd.f32 %v1639, %v1718
        %1720 = vmatmul.f32.gmra.mxu0 %v1657
        %v1721 = vpop.f32.mrf.mxu0
        %v1722 = vadd.f32 %v1639, %v1721
        %1723 = vmatmul.f32.gmra.mxu0 %v1660
        %v1724 = vpop.f32.mrf.mxu0
        %v1725 = vadd.f32 %v1639, %v1724
        %1726 = vmatmul.f32.gmra.mxu0 %v1663
        %v1727 = vpop.f32.mrf.mxu0
        %v1728 = vadd.f32 %v1639, %v1727
        %1729 = vmatmul.f32.gmra.mxu0 %v1666
        %v1730 = vpop.f32.mrf.mxu0
        %v1731 = vadd.f32 %v1639, %v1730
        %1732 = vmatmul.f32.gmra.mxu0 %v1669
        %v1733 = vpop.f32.mrf.mxu0
        %v1734 = vadd.f32 %v1639, %v1733
        %1735 = vmatmul.f32.gmra.mxu0 %v1672
        %v1736 = vpop.f32.mrf.mxu0
        %v1737 = vadd.f32 %v1639, %v1736
        %1738 = vmatmul.f32.gmra.mxu0 %v1675
        %v1739 = vpop.f32.mrf.mxu0
        %v1740 = vadd.f32 %v1639, %v1739
        %1741 = vmatmul.f32.gmra.mxu0 %v1678
        %v1742 = vpop.f32.mrf.mxu0
        %v1743 = vadd.f32 %v1639, %v1742
        %1744 = vmatmul.f32.gmra.mxu0 %v1681
        %v1745 = vpop.f32.mrf.mxu0
        %v1746 = vadd.f32 %v1639, %v1745
        %1747 = vmatmul.f32.gmra.mxu0 %v1684
        %v1748 = vpop.f32.mrf.mxu0
        %v1749 = vadd.f32 %v1639, %v1748
        %1750 = vmatmul.f32.gmra.mxu0 %v1687
        %v1751 = vpop.f32.mrf.mxu0
        %v1752 = vadd.f32 %v1639, %v1751
        %1753 = vdwg.mxu0
        %v1754 = vmax.f32 %v1707, 0.0
        %v1755 = vmax.f32 %v1710, 0.0
        %v1756 = vmax.f32 %v1713, 0.0
        %v1757 = vmax.f32 %v1716, 0.0
        %v1758 = vmax.f32 %v1719, 0.0
        %v1759 = vmax.f32 %v1722, 0.0
        %v1760 = vmax.f32 %v1725, 0.0
        %v1761 = vmax.f32 %v1728, 0.0
        %v1762 = vmax.f32 %v1731, 0.0
        %v1763 = vmax.f32 %v1734, 0.0
        %v1764 = vmax.f32 %v1737, 0.0
        %v1765 = vmax.f32 %v1740, 0.0
        %v1766 = vmax.f32 %v1743, 0.0
        %v1767 = vmax.f32 %v1746, 0.0
        %v1768 = vmax.f32 %v1749, 0.0
        %v1769 = vmax.f32 %v1752, 0.0
        %s1770 = scalar_lea.vmem %s7, 64
        %v1771 = vld [vmem:[%s1770] sm:$0xff]
        %v1772 = vld [vmem:[%s1770 + $0x8] sm:$0xff]
        %v1773 = vld [vmem:[%s1770 + $0x10] sm:$0xff]
        %v1774 = vld [vmem:[%s1770 + $0x18] sm:$0xff]
        %s1775 = scalar_lea.vmem %s8, 2
        %v1776 = vld [vmem:[%s1775] sm:$0x1]
        %v1778 = vperm.slane %v1776, 0
        %v1781 = vsel %vm780, %v1754, 0
        %v1784 = vsel %vm780, %v1755, 0
        %v1787 = vsel %vm780, %v1756, 0
        %v1790 = vsel %vm780, %v1757, 0
        %v1793 = vsel %vm780, %v1758, 0
        %v1796 = vsel %vm780, %v1759, 0
        %v1799 = vsel %vm780, %v1760, 0
        %v1802 = vsel %vm780, %v1761, 0
        %v1805 = vsel %vm780, %v1762, 0
        %v1808 = vsel %vm780, %v1763, 0
        %v1811 = vsel %vm780, %v1764, 0
        %v1814 = vsel %vm780, %v1765, 0
        %v1817 = vsel %vm780, %v1766, 0
        %v1820 = vsel %vm780, %v1767, 0
        %v1823 = vsel %vm780, %v1768, 0
        %v1826 = vsel %vm780, %v1769, 0
        %1828 = vmatpush.msra.mxu0 0.0
        %1829 = vmatpush.msra.mxu0 0.0
        %1830 = vmatpush.msra.mxu0 0.0
        %1831 = vmatpush.msra.mxu0 0.0
        %1832 = vmatpush.msra.mxu0 0.0
        %1833 = vmatpush.msra.mxu0 0.0
        %1834 = vmatpush.msra.mxu0 0.0
        %1835 = vmatpush.msra.mxu0 0.0
        %1836 = vmatpush.msra.mxu0 0.0
        %1837 = vmatpush.msra.mxu0 0.0
        %1838 = vmatpush.msra.mxu0 0.0
        %1839 = vmatpush.msra.mxu0 0.0
        %1840 = vmatpush.msra.mxu0 %v1774
        %1841 = vmatpush.msra.mxu0 %v1773
        %1842 = vmatpush.msra.mxu0 %v1772
        %1843 = vmatpush.msra.mxu0 %v1771
        %1844 = vmatmul.f32.gmra.mxu0 %v1781
        %v1845 = vpop.f32.mrf.mxu0
        %v1846 = vadd.f32 %v1778, %v1845
        %1847 = vmatmul.f32.gmra.mxu0 %v1784
        %v1848 = vpop.f32.mrf.mxu0
        %v1849 = vadd.f32 %v1778, %v1848
        %1850 = vmatmul.f32.gmra.mxu0 %v1787
        %v1851 = vpop.f32.mrf.mxu0
        %v1852 = vadd.f32 %v1778, %v1851
        %1853 = vmatmul.f32.gmra.mxu0 %v1790
        %v1854 = vpop.f32.mrf.mxu0
        %v1855 = vadd.f32 %v1778, %v1854
        %1856 = vmatmul.f32.gmra.mxu0 %v1793
        %v1857 = vpop.f32.mrf.mxu0
        %v1858 = vadd.f32 %v1778, %v1857
        %1859 = vmatmul.f32.gmra.mxu0 %v1796
        %v1860 = vpop.f32.mrf.mxu0
        %v1861 = vadd.f32 %v1778, %v1860
        %1862 = vmatmul.f32.gmra.mxu0 %v1799
        %v1863 = vpop.f32.mrf.mxu0
        %v1864 = vadd.f32 %v1778, %v1863
        %1865 = vmatmul.f32.gmra.mxu0 %v1802
        %v1866 = vpop.f32.mrf.mxu0
        %v1867 = vadd.f32 %v1778, %v1866
        %1868 = vmatmul.f32.gmra.mxu0 %v1805
        %v1869 = vpop.f32.mrf.mxu0
        %v1870 = vadd.f32 %v1778, %v1869
        %1871 = vmatmul.f32.gmra.mxu0 %v1808
        %v1872 = vpop.f32.mrf.mxu0
        %v1873 = vadd.f32 %v1778, %v1872
        %1874 = vmatmul.f32.gmra.mxu0 %v1811
        %v1875 = vpop.f32.mrf.mxu0
        %v1876 = vadd.f32 %v1778, %v1875
        %1877 = vmatmul.f32.gmra.mxu0 %v1814
        %v1878 = vpop.f32.mrf.mxu0
        %v1879 = vadd.f32 %v1778, %v1878
        %1880 = vmatmul.f32.gmra.mxu0 %v1817
        %v1881 = vpop.f32.mrf.mxu0
        %v1882 = vadd.f32 %v1778, %v1881
        %1883 = vmatmul.f32.gmra.mxu0 %v1820
        %v1884 = vpop.f32.mrf.mxu0
        %v1885 = vadd.f32 %v1778, %v1884
        %1886 = vmatmul.f32.gmra.mxu0 %v1823
        %v1887 = vpop.f32.mrf.mxu0
        %v1888 = vadd.f32 %v1778, %v1887
        %1889 = vmatmul.f32.gmra.mxu0 %v1826
        %v1890 = vpop.f32.mrf.mxu0
        %v1891 = vadd.f32 %v1778, %v1890
        %1892 = vdwg.mxu0
        %v1893 = vmax.f32 %v1846, 0.0
        %v1894 = vmax.f32 %v1849, 0.0
        %v1895 = vmax.f32 %v1852, 0.0
        %v1896 = vmax.f32 %v1855, 0.0
        %v1897 = vmax.f32 %v1858, 0.0
        %v1898 = vmax.f32 %v1861, 0.0
        %v1899 = vmax.f32 %v1864, 0.0
        %v1900 = vmax.f32 %v1867, 0.0
        %v1901 = vmax.f32 %v1870, 0.0
        %v1902 = vmax.f32 %v1873, 0.0
        %v1903 = vmax.f32 %v1876, 0.0
        %v1904 = vmax.f32 %v1879, 0.0
        %v1905 = vmax.f32 %v1882, 0.0
        %v1906 = vmax.f32 %v1885, 0.0
        %v1907 = vmax.f32 %v1888, 0.0
        %v1908 = vmax.f32 %v1891, 0.0
        %v1909 = vmul.f32 %v1893, %v1050
        %v1910 = vmul.f32 %v1894, %v1055
        %v1911 = vmul.f32 %v1895, %v1060
        %v1912 = vmul.f32 %v1896, %v1065
        %v1913 = vmul.f32 %v1897, %v1070
        %v1914 = vmul.f32 %v1898, %v1075
        %v1915 = vmul.f32 %v1899, %v1080
        %v1916 = vmul.f32 %v1900, %v1085
        %v1917 = vmul.f32 %v1901, %v1090
        %v1918 = vmul.f32 %v1902, %v1095
        %v1919 = vmul.f32 %v1903, %v1100
        %v1920 = vmul.f32 %v1904, %v1105
        %v1921 = vmul.f32 %v1905, %v1110
        %v1922 = vmul.f32 %v1906, %v1115
        %v1923 = vmul.f32 %v1907, %v1120
        %v1924 = vmul.f32 %v1908, %v1125
        %v1925 = vadd.f32 %v1909, %v644
        %v1926 = vadd.f32 %v1910, %v647
        %v1927 = vadd.f32 %v1911, %v650
        %v1928 = vadd.f32 %v1912, %v653
        %v1929 = vadd.f32 %v1913, %v656
        %v1930 = vadd.f32 %v1914, %v659
        %v1931 = vadd.f32 %v1915, %v662
        %v1932 = vadd.f32 %v1916, %v665
        %v1933 = vadd.f32 %v1917, %v668
        %v1934 = vadd.f32 %v1918, %v671
        %v1935 = vadd.f32 %v1919, %v674
        %v1936 = vadd.f32 %v1920, %v677
        %v1937 = vadd.f32 %v1921, %v680
        %v1938 = vadd.f32 %v1922, %v683
        %v1939 = vadd.f32 %v1923, %v686
        %v1940 = vadd.f32 %v1924, %v689
        %1941 = vmatpush.msra.mxu0 %v1940
        %1942 = vmatpush.msra.mxu0 %v1939
        %1943 = vmatpush.msra.mxu0 %v1938
        %1944 = vmatpush.msra.mxu0 %v1937
        %1945 = vmatpush.msra.mxu0 %v1936
        %1946 = vmatpush.msra.mxu0 %v1935
        %1947 = vmatpush.msra.mxu0 %v1934
        %1948 = vmatpush.msra.mxu0 %v1933
        %1949 = vmatpush.msra.mxu0 %v1932
        %1950 = vmatpush.msra.mxu0 %v1931
        %1951 = vmatpush.msra.mxu0 %v1930
        %1952 = vmatpush.msra.mxu0 %v1929
        %1953 = vmatpush.msra.mxu0 %v1928
        %1954 = vmatpush.msra.mxu0 %v1927
        %1955 = vmatpush.msra.mxu0 %v1926
        %1956 = vmatpush.msra.mxu0 %v1925
        %1957 = vmatmul.f32.gmra.mxu0 %v528
        %v1958 = vpop.f32.mrf.mxu0
        %v1959 = vadd.f32 0.0, %v1958
        %1960 = vmatmul.f32.gmra.mxu0 %v529
        %v1961 = vpop.f32.mrf.mxu0
        %v1962 = vadd.f32 0.0, %v1961
        %1963 = vmatmul.f32.gmra.mxu0 %v530
        %v1964 = vpop.f32.mrf.mxu0
        %v1965 = vadd.f32 0.0, %v1964
        %1966 = vmatmul.f32.gmra.mxu0 %v531
        %v1967 = vpop.f32.mrf.mxu0
        %v1968 = vadd.f32 0.0, %v1967
        %1969 = vmatmul.f32.gmra.mxu0 %v532
        %v1970 = vpop.f32.mrf.mxu0
        %v1971 = vadd.f32 0.0, %v1970
        %1972 = vmatmul.f32.gmra.mxu0 %v533
        %v1973 = vpop.f32.mrf.mxu0
        %v1974 = vadd.f32 0.0, %v1973
        %1975 = vmatmul.f32.gmra.mxu0 %v534
        %v1976 = vpop.f32.mrf.mxu0
        %v1977 = vadd.f32 0.0, %v1976
        %1978 = vmatmul.f32.gmra.mxu0 %v535
        %v1979 = vpop.f32.mrf.mxu0
        %v1980 = vadd.f32 0.0, %v1979
        %1981 = vmatmul.f32.gmra.mxu0 %v536
        %v1982 = vpop.f32.mrf.mxu0
        %v1983 = vadd.f32 0.0, %v1982
        %1984 = vmatmul.f32.gmra.mxu0 %v537
        %v1985 = vpop.f32.mrf.mxu0
        %v1986 = vadd.f32 0.0, %v1985
        %1987 = vmatmul.f32.gmra.mxu0 %v538
        %v1988 = vpop.f32.mrf.mxu0
        %v1989 = vadd.f32 0.0, %v1988
        %1990 = vmatmul.f32.gmra.mxu0 %v539
        %v1991 = vpop.f32.mrf.mxu0
        %v1992 = vadd.f32 0.0, %v1991
        %1993 = vmatmul.f32.gmra.mxu0 %v540
        %v1994 = vpop.f32.mrf.mxu0
        %v1995 = vadd.f32 0.0, %v1994
        %1996 = vmatmul.f32.gmra.mxu0 %v541
        %v1997 = vpop.f32.mrf.mxu0
        %v1998 = vadd.f32 0.0, %v1997
        %1999 = vmatmul.f32.gmra.mxu0 %v542
        %v2000 = vpop.f32.mrf.mxu0
        %v2001 = vadd.f32 0.0, %v2000
        %2002 = vmatmul.f32.gmra.mxu0 %v543
        %v2003 = vpop.f32.mrf.mxu0
        %v2004 = vadd.f32 0.0, %v2003
        %2005 = vdwg.mxu0
        %v2006 = vadd.f32 %v1925, %v1959
        %v2007 = vadd.f32 %v1926, %v1962
        %v2008 = vadd.f32 %v1927, %v1965
        %v2009 = vadd.f32 %v1928, %v1968
        %v2010 = vadd.f32 %v1929, %v1971
        %v2011 = vadd.f32 %v1930, %v1974
        %v2012 = vadd.f32 %v1931, %v1977
        %v2013 = vadd.f32 %v1932, %v1980
        %v2014 = vadd.f32 %v1933, %v1983
        %v2015 = vadd.f32 %v1934, %v1986
        %v2016 = vadd.f32 %v1935, %v1989
        %v2017 = vadd.f32 %v1936, %v1992
        %v2018 = vadd.f32 %v1937, %v1995
        %v2019 = vadd.f32 %v1938, %v1998
        %v2020 = vadd.f32 %v1939, %v2001
        %v2021 = vadd.f32 %v1940, %v2004
        %s2022 = scalar_lea.vmem %s5, 96
        %v2023 = vld [vmem:[%s2022] sm:$0xff]
        %v2024 = vld [vmem:[%s2022 + $0x8] sm:$0xff]
        %v2025 = vld [vmem:[%s2022 + $0x10] sm:$0xff]
        %v2026 = vld [vmem:[%s2022 + $0x18] sm:$0xff]
        %s2027 = scalar_lea.vmem %s6, 3
        %v2028 = vld [vmem:[%s2027] sm:$0x1]
        %v2030 = vperm.slane %v2028, 0
        %v2033 = vsel %vm780, %v2006, 0
        %v2036 = vsel %vm780, %v2007, 0
        %v2039 = vsel %vm780, %v2008, 0
        %v2042 = vsel %vm780, %v2009, 0
        %v2045 = vsel %vm780, %v2010, 0
        %v2048 = vsel %vm780, %v2011, 0
        %v2051 = vsel %vm780, %v2012, 0
        %v2054 = vsel %vm780, %v2013, 0
        %v2057 = vsel %vm780, %v2014, 0
        %v2060 = vsel %vm780, %v2015, 0
        %v2063 = vsel %vm780, %v2016, 0
        %v2066 = vsel %vm780, %v2017, 0
        %v2069 = vsel %vm780, %v2018, 0
        %v2072 = vsel %vm780, %v2019, 0
        %v2075 = vsel %vm780, %v2020, 0
        %v2078 = vsel %vm780, %v2021, 0
        %2080 = vmatpush.msra.mxu0 0.0
        %2081 = vmatpush.msra.mxu0 0.0
        %2082 = vmatpush.msra.mxu0 0.0
        %2083 = vmatpush.msra.mxu0 0.0
        %2084 = vmatpush.msra.mxu0 0.0
        %2085 = vmatpush.msra.mxu0 0.0
        %2086 = vmatpush.msra.mxu0 0.0
        %2087 = vmatpush.msra.mxu0 0.0
        %2088 = vmatpush.msra.mxu0 0.0
        %2089 = vmatpush.msra.mxu0 0.0
        %2090 = vmatpush.msra.mxu0 0.0
        %2091 = vmatpush.msra.mxu0 0.0
        %2092 = vmatpush.msra.mxu0 %v2026
        %2093 = vmatpush.msra.mxu0 %v2025
        %2094 = vmatpush.msra.mxu0 %v2024
        %2095 = vmatpush.msra.mxu0 %v2023
        %2096 = vmatmul.f32.gmra.mxu0 %v2033
        %v2097 = vpop.f32.mrf.mxu0
        %v2098 = vadd.f32 %v2030, %v2097
        %2099 = vmatmul.f32.gmra.mxu0 %v2036
        %v2100 = vpop.f32.mrf.mxu0
        %v2101 = vadd.f32 %v2030, %v2100
        %2102 = vmatmul.f32.gmra.mxu0 %v2039
        %v2103 = vpop.f32.mrf.mxu0
        %v2104 = vadd.f32 %v2030, %v2103
        %2105 = vmatmul.f32.gmra.mxu0 %v2042
        %v2106 = vpop.f32.mrf.mxu0
        %v2107 = vadd.f32 %v2030, %v2106
        %2108 = vmatmul.f32.gmra.mxu0 %v2045
        %v2109 = vpop.f32.mrf.mxu0
        %v2110 = vadd.f32 %v2030, %v2109
        %2111 = vmatmul.f32.gmra.mxu0 %v2048
        %v2112 = vpop.f32.mrf.mxu0
        %v2113 = vadd.f32 %v2030, %v2112
        %2114 = vmatmul.f32.gmra.mxu0 %v2051
        %v2115 = vpop.f32.mrf.mxu0
        %v2116 = vadd.f32 %v2030, %v2115
        %2117 = vmatmul.f32.gmra.mxu0 %v2054
        %v2118 = vpop.f32.mrf.mxu0
        %v2119 = vadd.f32 %v2030, %v2118
        %2120 = vmatmul.f32.gmra.mxu0 %v2057
        %v2121 = vpop.f32.mrf.mxu0
        %v2122 = vadd.f32 %v2030, %v2121
        %2123 = vmatmul.f32.gmra.mxu0 %v2060
        %v2124 = vpop.f32.mrf.mxu0
        %v2125 = vadd.f32 %v2030, %v2124
        %2126 = vmatmul.f32.gmra.mxu0 %v2063
        %v2127 = vpop.f32.mrf.mxu0
        %v2128 = vadd.f32 %v2030, %v2127
        %2129 = vmatmul.f32.gmra.mxu0 %v2066
        %v2130 = vpop.f32.mrf.mxu0
        %v2131 = vadd.f32 %v2030, %v2130
        %2132 = vmatmul.f32.gmra.mxu0 %v2069
        %v2133 = vpop.f32.mrf.mxu0
        %v2134 = vadd.f32 %v2030, %v2133
        %2135 = vmatmul.f32.gmra.mxu0 %v2072
        %v2136 = vpop.f32.mrf.mxu0
        %v2137 = vadd.f32 %v2030, %v2136
        %2138 = vmatmul.f32.gmra.mxu0 %v2075
        %v2139 = vpop.f32.mrf.mxu0
        %v2140 = vadd.f32 %v2030, %v2139
        %2141 = vmatmul.f32.gmra.mxu0 %v2078
        %v2142 = vpop.f32.mrf.mxu0
        %v2143 = vadd.f32 %v2030, %v2142
        %2144 = vdwg.mxu0
        %v2145 = vmax.f32 %v2098, 0.0
        %v2146 = vmax.f32 %v2101, 0.0
        %v2147 = vmax.f32 %v2104, 0.0
        %v2148 = vmax.f32 %v2107, 0.0
        %v2149 = vmax.f32 %v2110, 0.0
        %v2150 = vmax.f32 %v2113, 0.0
        %v2151 = vmax.f32 %v2116, 0.0
        %v2152 = vmax.f32 %v2119, 0.0
        %v2153 = vmax.f32 %v2122, 0.0
        %v2154 = vmax.f32 %v2125, 0.0
        %v2155 = vmax.f32 %v2128, 0.0
        %v2156 = vmax.f32 %v2131, 0.0
        %v2157 = vmax.f32 %v2134, 0.0
        %v2158 = vmax.f32 %v2137, 0.0
        %v2159 = vmax.f32 %v2140, 0.0
        %v2160 = vmax.f32 %v2143, 0.0
        %s2161 = scalar_lea.vmem %s7, 96
        %v2162 = vld [vmem:[%s2161] sm:$0xff]
        %v2163 = vld [vmem:[%s2161 + $0x8] sm:$0xff]
        %v2164 = vld [vmem:[%s2161 + $0x10] sm:$0xff]
        %v2165 = vld [vmem:[%s2161 + $0x18] sm:$0xff]
        %s2166 = scalar_lea.vmem %s8, 3
        %v2167 = vld [vmem:[%s2166] sm:$0x1]
        %v2169 = vperm.slane %v2167, 0
        %v2172 = vsel %vm780, %v2145, 0
        %v2175 = vsel %vm780, %v2146, 0
        %v2178 = vsel %vm780, %v2147, 0
        %v2181 = vsel %vm780, %v2148, 0
        %v2184 = vsel %vm780, %v2149, 0
        %v2187 = vsel %vm780, %v2150, 0
        %v2190 = vsel %vm780, %v2151, 0
        %v2193 = vsel %vm780, %v2152, 0
        %v2196 = vsel %vm780, %v2153, 0
        %v2199 = vsel %vm780, %v2154, 0
        %v2202 = vsel %vm780, %v2155, 0
        %v2205 = vsel %vm780, %v2156, 0
        %v2208 = vsel %vm780, %v2157, 0
        %v2211 = vsel %vm780, %v2158, 0
        %v2214 = vsel %vm780, %v2159, 0
        %v2217 = vsel %vm780, %v2160, 0
        %2219 = vmatpush.msra.mxu0 0.0
        %2220 = vmatpush.msra.mxu0 0.0
        %2221 = vmatpush.msra.mxu0 0.0
        %2222 = vmatpush.msra.mxu0 0.0
        %2223 = vmatpush.msra.mxu0 0.0
        %2224 = vmatpush.msra.mxu0 0.0
        %2225 = vmatpush.msra.mxu0 0.0
        %2226 = vmatpush.msra.mxu0 0.0
        %2227 = vmatpush.msra.mxu0 0.0
        %2228 = vmatpush.msra.mxu0 0.0
        %2229 = vmatpush.msra.mxu0 0.0
        %2230 = vmatpush.msra.mxu0 0.0
        %2231 = vmatpush.msra.mxu0 %v2165
        %2232 = vmatpush.msra.mxu0 %v2164
        %2233 = vmatpush.msra.mxu0 %v2163
        %2234 = vmatpush.msra.mxu0 %v2162
        %2235 = vmatmul.f32.gmra.mxu0 %v2172
        %v2236 = vpop.f32.mrf.mxu0
        %v2237 = vadd.f32 %v2169, %v2236
        %2238 = vmatmul.f32.gmra.mxu0 %v2175
        %v2239 = vpop.f32.mrf.mxu0
        %v2240 = vadd.f32 %v2169, %v2239
        %2241 = vmatmul.f32.gmra.mxu0 %v2178
        %v2242 = vpop.f32.mrf.mxu0
        %v2243 = vadd.f32 %v2169, %v2242
        %2244 = vmatmul.f32.gmra.mxu0 %v2181
        %v2245 = vpop.f32.mrf.mxu0
        %v2246 = vadd.f32 %v2169, %v2245
        %2247 = vmatmul.f32.gmra.mxu0 %v2184
        %v2248 = vpop.f32.mrf.mxu0
        %v2249 = vadd.f32 %v2169, %v2248
        %2250 = vmatmul.f32.gmra.mxu0 %v2187
        %v2251 = vpop.f32.mrf.mxu0
        %v2252 = vadd.f32 %v2169, %v2251
        %2253 = vmatmul.f32.gmra.mxu0 %v2190
        %v2254 = vpop.f32.mrf.mxu0
        %v2255 = vadd.f32 %v2169, %v2254
        %2256 = vmatmul.f32.gmra.mxu0 %v2193
        %v2257 = vpop.f32.mrf.mxu0
        %v2258 = vadd.f32 %v2169, %v2257
        %2259 = vmatmul.f32.gmra.mxu0 %v2196
        %v2260 = vpop.f32.mrf.mxu0
        %v2261 = vadd.f32 %v2169, %v2260
        %2262 = vmatmul.f32.gmra.mxu0 %v2199
        %v2263 = vpop.f32.mrf.mxu0
        %v2264 = vadd.f32 %v2169, %v2263
        %2265 = vmatmul.f32.gmra.mxu0 %v2202
        %v2266 = vpop.f32.mrf.mxu0
        %v2267 = vadd.f32 %v2169, %v2266
        %2268 = vmatmul.f32.gmra.mxu0 %v2205
        %v2269 = vpop.f32.mrf.mxu0
        %v2270 = vadd.f32 %v2169, %v2269
        %2271 = vmatmul.f32.gmra.mxu0 %v2208
        %v2272 = vpop.f32.mrf.mxu0
        %v2273 = vadd.f32 %v2169, %v2272
        %2274 = vmatmul.f32.gmra.mxu0 %v2211
        %v2275 = vpop.f32.mrf.mxu0
        %v2276 = vadd.f32 %v2169, %v2275
        %2277 = vmatmul.f32.gmra.mxu0 %v2214
        %v2278 = vpop.f32.mrf.mxu0
        %v2279 = vadd.f32 %v2169, %v2278
        %2280 = vmatmul.f32.gmra.mxu0 %v2217
        %v2281 = vpop.f32.mrf.mxu0
        %v2282 = vadd.f32 %v2169, %v2281
        %2283 = vdwg.mxu0
        %v2284 = vmax.f32 %v2237, 0.0
        %v2285 = vmax.f32 %v2240, 0.0
        %v2286 = vmax.f32 %v2243, 0.0
        %v2287 = vmax.f32 %v2246, 0.0
        %v2288 = vmax.f32 %v2249, 0.0
        %v2289 = vmax.f32 %v2252, 0.0
        %v2290 = vmax.f32 %v2255, 0.0
        %v2291 = vmax.f32 %v2258, 0.0
        %v2292 = vmax.f32 %v2261, 0.0
        %v2293 = vmax.f32 %v2264, 0.0
        %v2294 = vmax.f32 %v2267, 0.0
        %v2295 = vmax.f32 %v2270, 0.0
        %v2296 = vmax.f32 %v2273, 0.0
        %v2297 = vmax.f32 %v2276, 0.0
        %v2298 = vmax.f32 %v2279, 0.0
        %v2299 = vmax.f32 %v2282, 0.0
        %v2300 = vmul.f32 %v2284, %v1050
        %v2301 = vmul.f32 %v2285, %v1055
        %v2302 = vmul.f32 %v2286, %v1060
        %v2303 = vmul.f32 %v2287, %v1065
        %v2304 = vmul.f32 %v2288, %v1070
        %v2305 = vmul.f32 %v2289, %v1075
        %v2306 = vmul.f32 %v2290, %v1080
        %v2307 = vmul.f32 %v2291, %v1085
        %v2308 = vmul.f32 %v2292, %v1090
        %v2309 = vmul.f32 %v2293, %v1095
        %v2310 = vmul.f32 %v2294, %v1100
        %v2311 = vmul.f32 %v2295, %v1105
        %v2312 = vmul.f32 %v2296, %v1110
        %v2313 = vmul.f32 %v2297, %v1115
        %v2314 = vmul.f32 %v2298, %v1120
        %v2315 = vmul.f32 %v2299, %v1125
        %v2316 = vadd.f32 %v2300, %v644
        %v2317 = vadd.f32 %v2301, %v647
        %v2318 = vadd.f32 %v2302, %v650
        %v2319 = vadd.f32 %v2303, %v653
        %v2320 = vadd.f32 %v2304, %v656
        %v2321 = vadd.f32 %v2305, %v659
        %v2322 = vadd.f32 %v2306, %v662
        %v2323 = vadd.f32 %v2307, %v665
        %v2324 = vadd.f32 %v2308, %v668
        %v2325 = vadd.f32 %v2309, %v671
        %v2326 = vadd.f32 %v2310, %v674
        %v2327 = vadd.f32 %v2311, %v677
        %v2328 = vadd.f32 %v2312, %v680
        %v2329 = vadd.f32 %v2313, %v683
        %v2330 = vadd.f32 %v2314, %v686
        %v2331 = vadd.f32 %v2315, %v689
        %v2332 = vld [vmem:[#allocation5] sm:$0xff]
        %v2333 = vld [vmem:[#allocation5 + $0x8] sm:$0xff]
        %v2334 = vld [vmem:[#allocation5 + $0x10] sm:$0xff]
        %v2335 = vld [vmem:[#allocation5 + $0x18] sm:$0xff]
        %v2337 = vsel %vm780, %v2316, 0
        %v2340 = vsel %vm780, %v2317, 0
        %v2343 = vsel %vm780, %v2318, 0
        %v2346 = vsel %vm780, %v2319, 0
        %v2349 = vsel %vm780, %v2320, 0
        %v2352 = vsel %vm780, %v2321, 0
        %v2355 = vsel %vm780, %v2322, 0
        %v2358 = vsel %vm780, %v2323, 0
        %v2361 = vsel %vm780, %v2324, 0
        %v2364 = vsel %vm780, %v2325, 0
        %v2367 = vsel %vm780, %v2326, 0
        %v2370 = vsel %vm780, %v2327, 0
        %v2373 = vsel %vm780, %v2328, 0
        %v2376 = vsel %vm780, %v2329, 0
        %v2379 = vsel %vm780, %v2330, 0
        %v2382 = vsel %vm780, %v2331, 0
        %2384 = vmatpush.msra.mxu0 0.0
        %2385 = vmatpush.msra.mxu0 0.0
        %2386 = vmatpush.msra.mxu0 0.0
        %2387 = vmatpush.msra.mxu0 0.0
        %2388 = vmatpush.msra.mxu0 0.0
        %2389 = vmatpush.msra.mxu0 0.0
        %2390 = vmatpush.msra.mxu0 0.0
        %2391 = vmatpush.msra.mxu0 0.0
        %2392 = vmatpush.msra.mxu0 0.0
        %2393 = vmatpush.msra.mxu0 0.0
        %2394 = vmatpush.msra.mxu0 0.0
        %2395 = vmatpush.msra.mxu0 0.0
        %2396 = vmatpush.msra.mxu0 %v2335
        %2397 = vmatpush.msra.mxu0 %v2334
        %2398 = vmatpush.msra.mxu0 %v2333
        %2399 = vmatpush.msra.mxu0 %v2332
        %2400 = vmatmul.f32.gmra.mxu0 %v2337
        %v2401 = vpop.f32.mrf.mxu0
        %v2402 = vadd.f32 0.0, %v2401
        %2403 = vmatmul.f32.gmra.mxu0 %v2340
        %v2404 = vpop.f32.mrf.mxu0
        %v2405 = vadd.f32 0.0, %v2404
        %2406 = vmatmul.f32.gmra.mxu0 %v2343
        %v2407 = vpop.f32.mrf.mxu0
        %v2408 = vadd.f32 0.0, %v2407
        %2409 = vmatmul.f32.gmra.mxu0 %v2346
        %v2410 = vpop.f32.mrf.mxu0
        %v2411 = vadd.f32 0.0, %v2410
        %2412 = vmatmul.f32.gmra.mxu0 %v2349
        %v2413 = vpop.f32.mrf.mxu0
        %v2414 = vadd.f32 0.0, %v2413
        %2415 = vmatmul.f32.gmra.mxu0 %v2352
        %v2416 = vpop.f32.mrf.mxu0
        %v2417 = vadd.f32 0.0, %v2416
        %2418 = vmatmul.f32.gmra.mxu0 %v2355
        %v2419 = vpop.f32.mrf.mxu0
        %v2420 = vadd.f32 0.0, %v2419
        %2421 = vmatmul.f32.gmra.mxu0 %v2358
        %v2422 = vpop.f32.mrf.mxu0
        %v2423 = vadd.f32 0.0, %v2422
        %2424 = vmatmul.f32.gmra.mxu0 %v2361
        %v2425 = vpop.f32.mrf.mxu0
        %v2426 = vadd.f32 0.0, %v2425
        %2427 = vmatmul.f32.gmra.mxu0 %v2364
        %v2428 = vpop.f32.mrf.mxu0
        %v2429 = vadd.f32 0.0, %v2428
        %2430 = vmatmul.f32.gmra.mxu0 %v2367
        %v2431 = vpop.f32.mrf.mxu0
        %v2432 = vadd.f32 0.0, %v2431
        %2433 = vmatmul.f32.gmra.mxu0 %v2370
        %v2434 = vpop.f32.mrf.mxu0
        %v2435 = vadd.f32 0.0, %v2434
        %2436 = vmatmul.f32.gmra.mxu0 %v2373
        %v2437 = vpop.f32.mrf.mxu0
        %v2438 = vadd.f32 0.0, %v2437
        %2439 = vmatmul.f32.gmra.mxu0 %v2376
        %v2440 = vpop.f32.mrf.mxu0
        %v2441 = vadd.f32 0.0, %v2440
        %2442 = vmatmul.f32.gmra.mxu0 %v2379
        %v2443 = vpop.f32.mrf.mxu0
        %v2444 = vadd.f32 0.0, %v2443
        %2445 = vmatmul.f32.gmra.mxu0 %v2382
        %v2446 = vpop.f32.mrf.mxu0
        %v2447 = vadd.f32 0.0, %v2446
        %2448 = vdwg.mxu0
        %v2449 = vld [vmem:[%s445] sm:$0xff]
        %v2450 = vld [vmem:[%s445 + $0x8] sm:$0xff]
        %2451 = vmatpush.msra.mxu0 %v2447
        %2452 = vmatpush.msra.mxu0 %v2444
        %2453 = vmatpush.msra.mxu0 %v2441
        %2454 = vmatpush.msra.mxu0 %v2438
        %2455 = vmatpush.msra.mxu0 %v2435
        %2456 = vmatpush.msra.mxu0 %v2432
        %2457 = vmatpush.msra.mxu0 %v2429
        %2458 = vmatpush.msra.mxu0 %v2426
        %2459 = vmatpush.msra.mxu0 %v2423
        %2460 = vmatpush.msra.mxu0 %v2420
        %2461 = vmatpush.msra.mxu0 %v2417
        %2462 = vmatpush.msra.mxu0 %v2414
        %2463 = vmatpush.msra.mxu0 %v2411
        %2464 = vmatpush.msra.mxu0 %v2408
        %2465 = vmatpush.msra.mxu0 %v2405
        %2466 = vmatpush.msra.mxu0 %v2402
        %2467 = vmatmul.f32.gmra.mxu0 %v2449
        %v2468 = vpop.f32.mrf.mxu0
        %v2469 = vadd.f32 0.0, %v2468
        %2470 = vmatmul.f32.gmra.mxu0 %v2450
        %v2471 = vpop.f32.mrf.mxu0
        %v2472 = vadd.f32 0.0, %v2471
        %2473 = vdwg.mxu0
        %v2474 = vld [vmem:[#allocation7] sm:$0xff]
        %v2475 = vld [vmem:[#allocation7 + $0x8] sm:$0xff]
        %v2476 = vld [vmem:[#allocation7 + $0x10] sm:$0xff]
        %v2477 = vld [vmem:[#allocation7 + $0x18] sm:$0xff]
        %v2478 = vld [vmem:[%s11] sm:$0x1]
        %v2480 = vperm.slane %v2478, 0
        %v2483 = vsel %vm780, %v2469, 0
        %v2486 = vsel %vm780, %v2472, 0
        %2488 = vmatpush.msra.mxu0 0.0
        %2489 = vmatpush.msra.mxu0 0.0
        %2490 = vmatpush.msra.mxu0 0.0
        %2491 = vmatpush.msra.mxu0 0.0
        %2492 = vmatpush.msra.mxu0 0.0
        %2493 = vmatpush.msra.mxu0 0.0
        %2494 = vmatpush.msra.mxu0 0.0
        %2495 = vmatpush.msra.mxu0 0.0
        %2496 = vmatpush.msra.mxu0 0.0
        %2497 = vmatpush.msra.mxu0 0.0
        %2498 = vmatpush.msra.mxu0 0.0
        %2499 = vmatpush.msra.mxu0 0.0
        %2500 = vmatpush.msra.mxu0 %v2477
        %2501 = vmatpush.msra.mxu0 %v2476
        %2502 = vmatpush.msra.mxu0 %v2475
        %2503 = vmatpush.msra.mxu0 %v2474
        %2504 = vmatmul.f32.gmra.mxu0 %v2483
        %v2505 = vpop.f32.mrf.mxu0
        %v2506 = vadd.f32 %v2480, %v2505
        %2507 = vmatmul.f32.gmra.mxu0 %v2486
        %v2508 = vpop.f32.mrf.mxu0
        %v2509 = vadd.f32 %v2480, %v2508
        %2510 = vdwg.mxu0
        %2511 = vst [vmem:[%s511] sm:$0xff] %v2506
        %2512 = vst [vmem:[%s511 + $0x8] sm:$0xff] %v2509
        %s2513 = sand.u32 %s310, 1
        %s2514 = scalar_lea.sflag [#allocation4], %s2513
        %s2515 = sand.u32 %s310, 1
        %s2516 = smul.addr %s2515, 16
        %s2517 = scalar_lea.vmem [#allocation8], %s2516
        // Predicated region
        $region81: #{tpu_custom_call.1} parent=67 // pred_check
          %p2518 = pneg %p320
        $region82: #{tpu_custom_call.1} parent=67 // pred_check_branch
          %2520 = sbr.rel (%p2518) target = $region84
        $region83: #{tpu_custom_call.1} parent=67 // pred_region
          %s2521 = smul.u32 2, %s30
          %2523 = vsyncadd %s2514, 0
          %s2524 = smul.addr %s2521, 8
          %s2525 = scalar_lea.hbm %s12, %s2524
          %s2526 = sshll.u32 %s2517, 4
          %s2527 = int_to_ptr.vmem [resolvable:$true] %s2526
          %s2528 = sshll.u32 %s2525, 4
          %s2529 = int_to_ptr.hbm [resolvable:$true] %s2528
          %2534 = dma.vmem_to_hbm [thread:$0]  %s2527, 256, %s2529, %s2514, 128, 128, 8
        $region84: #{tpu_custom_call.1} parent=67 // pred_fallthru
          _
      $region68: #{tpu_custom_call.1} parent=5 // pred_fallthru
        _
      %p2535 = scmp.le.s32.totalorder 2, %s25
      // Predicated region
      $region85: #{tpu_custom_call.1} parent=5 // pred_check
        %p2536 = pneg %p2535
      $region86: #{tpu_custom_call.1} parent=5 // pred_check_branch
        %2538 = sbr.rel (%p2536) target = $region88
      $region87: #{tpu_custom_call.1} parent=5 // pred_region
        %s2539 = ssub.s32 %s25, 2
        // Predicated region
        $region89: #{tpu_custom_call.1} parent=87 // pred_check
          %p2540 = pneg %p326
        $region90: #{tpu_custom_call.1} parent=87 // pred_check_branch
          %2542 = sbr.rel (%p2540) target = $region92
        $region91: #{tpu_custom_call.1} parent=87 // pred_region
          %s2543 = sand.u32 %s311, 1
          %s2544 = scalar_lea.sflag [#allocation4], %s2543
          %s2545 = sand.u32 %s311, 1
          %s2546 = smul.addr %s2545, 16
          %s2547 = scalar_lea.vmem [#allocation8], %s2546
          %2549 = dma.done %s2544, 256
        $region92: #{tpu_custom_call.1} parent=87 // pred_fallthru
          _
      $region88: #{tpu_custom_call.1} parent=5 // pred_fallthru
        _
    $region6: #{tpu_custom_call.1} parent=1 // loop_footer
      %s29 = sadd.s32 1, %s25
    $region7: #{tpu_custom_call.1} parent=1 // loop_footer_branch
      %24 = sbr.rel target = $region3
    $region8: #{tpu_custom_call.1} parent=1 // loop_exit
      _
    %2550 = vsyncpa [#allocation3], 1
    %s2551 = scalar_lea.sflag [#allocation3], 1
    %2552 = vsyncpa %s2551, 1
    %2553 = vsyncpa [#allocation6], 1
    %2554 = vsyncpa [#allocation4], 1
    %s2555 = scalar_lea.sflag [#allocation4], 1
    %2556 = vsyncpa %s2555, 1

</llo_original>
